<compile_context>
chip_gen: v6e
topology: v6e:2x2x1
jax: 0.10.0
libtpu: 0.0.40
codegen_flags: <defaults>
</compile_context>

<pallas_src>
import functools
import math

import jax
import jax.numpy as jnp
import numpy as np
from jax.experimental import pallas as pl
from jax.experimental.pallas import tpu as pltpu


def _gelu_tanh(x):
    # tanh-approx GELU: tanh runs on the EUP (separate VLIW slot) instead of a ~10-op
    # f32 VALU erf polynomial; |err| vs exact GELU ~1e-3, well inside test tolerance.
    c = math.sqrt(2.0 / math.pi)
    return 0.5 * x * (1.0 + jnp.tanh(c * (x + 0.044715 * x * x * x)))


def _round_up(x, m):
    return -(-x // m) * m


_BUFFERED = getattr(pl, "Buffered", None)


def _const_spec(shape):
    """BlockSpec for a grid-constant operand; single-buffered when supported."""
    idx = lambda b, i: (0,) * len(shape)
    if _BUFFERED is not None:
        try:
            return pl.BlockSpec(shape, idx, pipeline_mode=_BUFFERED(buffer_count=1))
        except TypeError:
            pass
    return pl.BlockSpec(shape, idx)


def sparse_cross_encoder_block(query, key_value, params, *, head_num, span, stride,
                               q_tile=None):
    B, Lq, Dq = query.shape
    Bk, Lkv, Dkv = key_value.shape
    assert Bk == B
    H = head_num
    assert Dq % H == 0
    dQK = Dq // H
    dV = Dq // H
    Hd = H * dQK
    HdV = H * dV
    assert (Lkv - 1) // stride + 1 == Lq, "length_kv / stride must map onto length_q"

    gamma, beta, Wq, Wk, Wv, Wo, conv_b, W1, b1, W2, b2 = params

    # ---- static gather / mask metadata (kv index = q*stride + s - (span-1)) -----------
    MS = _round_up(span - 1, stride) // stride if span > 1 else 0   # max sublane shift
    slots = []
    for s in range(span):
        d = span - 1 - s                       # kv index = q*stride - d
        shift = -(-d // stride)                # ceil(d / stride)
        phase = (-d) % stride
        lo = shift                             # valid iff q >= lo ...
        hi = (Lkv - 1 + d) // stride           # ... and q <= hi
        slots.append((shift, phase, lo, hi))
    phases = sorted({p for _, p, _, _ in slots})
    n_ph = len(phases)
    phase_pos = {c: i for i, c in enumerate(phases)}

    # ---- q tiling ----------------------------------------------------------------------
    if q_tile is None:
        cap_rows = 512 if Dq <= 256 else 256   # large Dq -> cap TQ (VMEM, v7x 64 MiB)
        TQ = Lq
        for cand in (512, 256, 128, 64, 32, 16, 8):
            if cand <= cap_rows and Lq % cand == 0:
                TQ = cand
                break
    else:
        TQ = q_tile
    assert Lq % TQ == 0
    nQT = Lq // TQ
    assert nQT == 1 or TQ % 8 == 0
    RWS = _round_up(TQ + MS, 8)                # kv-phase rows per tile (halo included)
    SW = max(128, _round_up(H, 128))           # lane width of the narrow score slab

    # ---- wrapper-side layout plumbing (cheap one-time XLA ops) --------------------------
    kv = key_value
    if Lq * stride != Lkv:                     # right-pad kv rows (padded rows are masked)
        kv = jnp.pad(kv, ((0, 0), (0, Lq * stride - Lkv), (0, 0)))
    # phase-major: row q of phase c holds kv row q*stride + c
    kv_ph = kv.reshape(B, Lq, stride, Dkv).transpose(0, 2, 1, 3)     # (B, stride, Lq, Dkv)
    kv_ph = kv_ph[:, np.asarray(phases, np.int32)]                    # keep used phases only
    total_rows = (nQT - 1) * TQ + RWS
    kv_ph = jnp.pad(kv_ph, ((0, 0), (0, 0), (MS, total_rows - Lq - MS), (0, 0)))
    # overlapping per-tile windows (halo of MS rows duplicated) -> clean per-tile blocks
    rows_np = np.arange(nQT)[:, None] * TQ + np.arange(RWS)[None, :]  # (nQT, RWS)
    kv_win = kv_ph[:, :, rows_np, :]                                  # (B, n_ph, nQT, RWS, Dkv)
    kv_win = kv_win.transpose(0, 2, 1, 3, 4).reshape(B, nQT, n_ph * RWS, Dkv)
    kv_win = kv_win.astype(jnp.bfloat16)       # matmul-only operand -> bf16 halves DMA/VMEM

    # fused K|V projection, score-reduce and probability-broadcast matrices (bf16 MXU)
    Wkv = jnp.concatenate([Wk, Wv], axis=1).astype(jnp.bfloat16)      # (Dkv, Hd+HdV)
    rsum_np = np.zeros((Hd, SW), np.float32)   # column h sums head h's dQK lanes
    bexp_np = np.zeros((SW, HdV), np.float32)  # row h broadcasts to head h's dV lanes
    for h in range(H):
        rsum_np[h * dQK:(h + 1) * dQK, h] = 1.0
        bexp_np[h, h * dV:(h + 1) * dV] = 1.0
    Rsum = jnp.asarray(rsum_np, jnp.bfloat16)
    Bexp = jnp.asarray(bexp_np, jnp.bfloat16)

    Wq_b = (Wq * (1.0 / math.sqrt(dQK))).astype(jnp.bfloat16)         # fold 1/sqrt(dQK)
    Wo_b = Wo.astype(jnp.bfloat16)
    W1_b = W1.astype(jnp.bfloat16)
    W2_b = W2.astype(jnp.bfloat16)

    def kernel(cb_ref, q_ref, kv_ref, wq_ref, wkv_ref, rsum_ref, bexp_ref, wo_ref,
               w1_ref, w2_ref, g_ref, bt_ref, b1_ref, b2_ref, out_ref, kvp_ref):
        qt = pl.program_id(1)
        x = q_ref[0]                           # (TQ, Dq) f32 original query tile
        gamma_v = g_ref[...]                   # (1, Dq)
        beta_v = bt_ref[...]

        def layer_norm(v):                     # fp32 elementwise (v5e has no bf16 VPU)
            mu = jnp.mean(v, axis=-1, keepdims=True)
            var = jnp.mean((v - mu) * (v - mu), axis=-1, keepdims=True)
            return (v - mu) * jax.lax.rsqrt(var + 1e-5) * gamma_v + beta_v

        # ---- Q projection (scale pre-folded into Wq) ----------------------------------
        xn = layer_norm(x)
        q_scaled = jnp.dot(xn.astype(jnp.bfloat16), wq_ref[...],
                           preferred_element_type=jnp.float32)        # (TQ, Hd)
        rsum = rsum_ref[...]
        qsum = jnp.dot(q_scaled.astype(jnp.bfloat16), rsum,
                       preferred_element_type=jnp.float32)            # (TQ, SW) per-head sums

        # ---- fused K|V projection per stride-phase, stored bf16 in VMEM scratch -------
        wkv = wkv_ref[...]
        for pidx in range(n_ph):
            kv_c = kv_ref[0, 0, pidx * RWS:(pidx + 1) * RWS, :]       # (RWS, Dkv) bf16
            proj = jnp.dot(kv_c, wkv, preferred_element_type=jnp.float32)
            kvp_ref[pidx] = proj.astype(jnp.bfloat16)                 # (RWS, Hd+HdV)

        # ---- pass A: narrow (<=128 lane) per-head scores for every span slot -----------
        row_idx = qt * TQ + jax.lax.broadcasted_iota(jnp.int32, (TQ, 1), 0)
        scores = []
        for s, (shift, c, lo, hi) in enumerate(slots):
            pidx = phase_pos[c]
            off = MS - shift                                          # static >= 0
            Kp = kvp_ref[pidx, off:off + TQ, 0:Hd].astype(jnp.float32)
            sc = jnp.dot((q_scaled * Kp).astype(jnp.bfloat16), rsum,
                         preferred_element_type=jnp.float32)          # (TQ, SW)
            sc = sc + cb_ref[s] * qsum                                # Conv1d bias on K
            need_lo, need_hi = lo > 0, hi < Lq - 1
            if need_lo or need_hi:
                cond = None
                if need_lo:
                    cond = row_idx >= lo
                if need_hi:
                    c2 = row_idx <= hi
                    cond = c2 if cond is None else jnp.logical_and(cond, c2)
                sc = jnp.where(cond, sc, -1e30)
            scores.append(sc)

        m = scores[0]
        for sc in scores[1:]:
            m = jnp.maximum(m, sc)
        ps = [jnp.exp(sc - m) for sc in scores]
        l = ps[0]
        for p in ps[1:]:
            l = l + p
        inv_l = 1.0 / l                        # exact divide; narrow so it is cheap

        # ---- pass B: broadcast softmax weights to HdV lanes, accumulate V --------------
        bexp = bexp_ref[...]
        acc = None
        wbias = None
        for s, (shift, c, lo, hi) in enumerate(slots):
            pidx = phase_pos[c]
            off = MS - shift
            w = ps[s] * inv_l                                          # (TQ, SW)
            wb = jnp.dot(w.astype(jnp.bfloat16), bexp,
                         preferred_element_type=jnp.float32)           # (TQ, HdV)
            Vp = kvp_ref[pidx, off:off + TQ, Hd:Hd + HdV].astype(jnp.float32)
            contrib = wb * Vp
            acc = contrib if acc is None else acc + contrib
            wbias = cb_ref[s] * w if wbias is None else wbias + cb_ref[s] * w
        # Conv1d bias on V, folded: (sum_s bias_s * w_s) broadcast once
        acc = acc + jnp.dot(wbias.astype(jnp.bfloat16), bexp,
                            preferred_element_type=jnp.float32)

        attn_out = jnp.dot(acc.astype(jnp.bfloat16), wo_ref[...],
                           preferred_element_type=jnp.float32)         # (TQ, Dq)
        # TODO(synk): nn.Dropout has no inference-time effect; implemented as identity.
        res1 = attn_out + x

        # ---- MLP (shared LayerNorm params, tanh-approx GELU, f32 elementwise) ----------
        xn2 = layer_norm(res1)
        hdn = jnp.dot(xn2.astype(jnp.bfloat16), w1_ref[...],
                      preferred_element_type=jnp.float32) + b1_ref[...]
        hdn = _gelu_tanh(hdn)
        y = jnp.dot(hdn.astype(jnp.bfloat16), w2_ref[...],
                    preferred_element_type=jnp.float32) + b2_ref[...]
        out_ref[0] = (y + res1).astype(out_ref.dtype)

    qmap = lambda b, i: (b, i, 0)
    kvmap = lambda b, i: (b, i, 0, 0)

    in_specs = [
        pl.BlockSpec(memory_space=pltpu.MemorySpace.SMEM),             # Conv1d bias (span,)
        pl.BlockSpec((1, TQ, Dq), qmap),                               # query tile
        pl.BlockSpec((1, 1, n_ph * RWS, Dkv), kvmap),                  # kv phase window (+halo)
        _const_spec((Dq, Hd)),                                         # Wq (pre-scaled)
        _const_spec((Dkv, Hd + HdV)),                                  # Wk | Wv fused
        _const_spec((Hd, SW)),                                         # per-head score reduce
        _const_spec((SW, HdV)),                                        # head -> dV broadcast
        _const_spec((HdV, Dq)),                                        # Wo
        _const_spec((Dq, 2 * Dq)),                                     # W1
        _const_spec((2 * Dq, Dq)),                                     # W2
        _const_spec((1, Dq)),                                          # LN gamma
        _const_spec((1, Dq)),                                          # LN beta
        _const_spec((1, 2 * Dq)),                                      # b1
        _const_spec((1, Dq)),                                          # b2
    ]

    # ---- generation-aware VMEM limit (v7x has only 64 MiB / TC) -------------------------
    q_blk = TQ * Dq * 4
    kv_blk = n_ph * RWS * Dkv * 2
    out_blk = TQ * Dq * 4
    w_bytes = 2 * (Dq * Hd + Dkv * (Hd + HdV) + Hd * SW + SW * HdV + HdV * Dq
                   + Dq * 2 * Dq + 2 * Dq * Dq) + 4 * (Dq + Dq + 2 * Dq + Dq)
    scratch_bytes = n_ph * RWS * (Hd + HdV) * 2
    live_bytes = 4 * TQ * (Hd + HdV + 4 * Dq) + 4 * span * TQ * SW * 2
    need = 2 * (q_blk + kv_blk + out_blk) + w_bytes + scratch_bytes + live_bytes + (8 << 20)
    try:
        cap = int(getattr(pltpu.get_tpu_info(), "vmem_capacity_bytes", 64 << 20))
    except Exception:
        cap = 64 << 20
    vmem_limit = int(min(int(0.75 * cap), max(need, 32 << 20)))
    vmem_limit = max(vmem_limit, int(need))

    flops = 2 * B * Lq * (Dq * Hd + Hd * SW
                          + span * (Hd * SW + SW * HdV) + SW * HdV
                          + HdV * Dq + 2 * Dq * 2 * Dq)
    flops += 2 * B * nQT * n_ph * RWS * Dkv * (Hd + HdV)
    transcendentals = B * Lq * (span * SW + 2 * Dq + 2)
    bytes_accessed = (query.size * 4 + kv_win.size * 2 + B * Lq * Dq * 4
                      + (Wq.size + Wk.size + Wv.size + Wo.size + W1.size + W2.size) * 2)

    out = pl.pallas_call(
        kernel,
        out_shape=jax.ShapeDtypeStruct((B, Lq, Dq), jnp.float32),
        grid=(B, nQT),
        in_specs=in_specs,
        out_specs=pl.BlockSpec((1, TQ, Dq), qmap),
        scratch_shapes=[pltpu.VMEM((n_ph, RWS, Hd + HdV), jnp.bfloat16)],
        compiler_params=pltpu.CompilerParams(
            dimension_semantics=("parallel", "parallel"),
            vmem_limit_bytes=vmem_limit),
        cost_estimate=pl.CostEstimate(
            flops=int(flops), transcendentals=int(transcendentals),
            bytes_accessed=int(bytes_accessed)),
    )(conv_b, query, kv_win, Wq_b, Wkv, Rsum, Bexp, Wo_b, W1_b, W2_b, gamma, beta, b1, b2)
    return out


def reference(query, key_value, params, *, head_num, span, stride):
    """Pure-JAX (fp32) re-implementation of the PyTorch module (eval mode)."""
    B, Lq, Dq = query.shape
    _, Lkv, Dkv = key_value.shape
    H = head_num
    dQK = Dq // H
    dV = Dq // H
    gamma, beta, Wq, Wk, Wv, Wo, conv_b, W1, b1, W2, b2 = params

    def ln(x):
        mu = jnp.mean(x, -1, keepdims=True)
        var = jnp.mean((x - mu) ** 2, -1, keepdims=True)
        return (x - mu) / jnp.sqrt(var + 1e-5) * gamma + beta

    x = ln(query)
    Q = (x @ Wq).reshape(B, Lq, H, dQK)
    K = (key_value @ Wk).reshape(B, Lkv, H, dQK)
    V = (key_value @ Wv).reshape(B, Lkv, H, dV)

    q_pos = np.arange(Lq)[:, None]
    s_pos = np.arange(span)[None, :]
    kv_idx = q_pos * stride + s_pos - (span - 1)          # (Lq, span)
    valid = (kv_idx >= 0) & (kv_idx < Lkv)
    gidx = np.clip(kv_idx, 0, Lkv - 1)
    vmask = jnp.asarray(valid)[None, :, :, None, None]

    Kg = jnp.where(vmask, K[:, gidx], 0.0) + conv_b[None, None, :, None, None]
    Vg = jnp.where(vmask, V[:, gidx], 0.0) + conv_b[None, None, :, None, None]

    S = jnp.einsum('blhd,blshd->blhs', Q, Kg) / np.sqrt(dQK)
    S = jnp.where(jnp.asarray(valid)[None, :, None, :], S, -jnp.inf)
    P = jax.nn.softmax(S, axis=-1)
    O = jnp.einsum('blhs,blshd->blhd', P, Vg).reshape(B, Lq, H * dV)
    attn = O @ Wo
    r1 = attn + query
    x2 = ln(r1)
    h = jax.nn.gelu(x2 @ W1 + b1, approximate=False)
    return h @ W2 + b2 + r1


def init_params(key, Dq, Dkv, H, span):
    dQK = Dq // H
    ks = jax.random.split(key, 11)

    def lin(k, fan_in, fan_out):
        return jax.random.normal(k, (fan_in, fan_out), jnp.float32) / np.sqrt(fan_in)

    gamma = 1.0 + 0.1 * jax.random.normal(ks[0], (1, Dq), jnp.float32)
    beta = 0.1 * jax.random.normal(ks[1], (1, Dq), jnp.float32)
    Wq = lin(ks[2], Dq, H * dQK)
    Wk = lin(ks[3], Dkv, H * dQK)
    Wv = lin(ks[4], Dkv, H * dQK)
    Wo = lin(ks[5], H * dQK, Dq)
    conv_b = 0.1 * jax.random.normal(ks[6], (span,), jnp.float32)   # Conv1d bias
    W1 = lin(ks[7], Dq, 2 * Dq)
    b1 = 0.1 * jax.random.normal(ks[8], (1, 2 * Dq), jnp.float32)
    W2 = lin(ks[9], 2 * Dq, Dq)
    b2 = 0.1 * jax.random.normal(ks[10], (1, Dq), jnp.float32)
    return (gamma, beta, Wq, Wk, Wv, Wo, conv_b, W1, b1, W2, b2)


if __name__ == "__main__":
    B, Dq, Dkv, H = 2, 128, 64, 4
    stride, span = 2, 3
    Lq = 32
    Lkv = Lq * stride          # encoder: length_kv = length_q * stride

    key = jax.random.PRNGKey(0)
    kq, kkv, kp = jax.random.split(key, 3)
    query = jax.random.normal(kq, (B, Lq, Dq), jnp.float32)
    key_value = jax.random.normal(kkv, (B, Lkv, Dkv), jnp.float32)
    params = init_params(kp, Dq, Dkv, H, span)

    # q_tile=16 exercises the multi-q-tile (windowed kv) path at small scale.
    fn = jax.jit(functools.partial(sparse_cross_encoder_block,
                                   head_num=H, span=span, stride=stride, q_tile=16))
    out = jax.block_until_ready(fn(query, key_value, params))

    ref = jax.block_until_ready(
        reference(query, key_value, params, head_num=H, span=span, stride=stride))

    # bf16 MXU inputs (and tanh GELU) in the kernel vs an fp32 exact reference.
    np.testing.assert_allclose(np.asarray(out), np.asarray(ref), rtol=5e-2, atol=5e-2)

    print("KERNEL_OK")
</pallas_src>

<mosaic_0001>
module attributes {stable_mosaic.version = 11 : i64} {
  func.func @kernel(%arg0: i32, %arg1: i32, %arg2: memref<3xf32, #tpu.memory_space<smem>>, %arg3: memref<1x16x128xf32, #tpu.memory_space<vmem>>, %arg4: memref<1x1x48x64xbf16, #tpu.memory_space<vmem>>, %arg5: memref<128x128xbf16, #tpu.memory_space<vmem>>, %arg6: memref<64x256xbf16, #tpu.memory_space<vmem>>, %arg7: memref<128x128xbf16, #tpu.memory_space<vmem>>, %arg8: memref<128x128xbf16, #tpu.memory_space<vmem>>, %arg9: memref<128x128xbf16, #tpu.memory_space<vmem>>, %arg10: memref<128x256xbf16, #tpu.memory_space<vmem>>, %arg11: memref<256x128xbf16, #tpu.memory_space<vmem>>, %arg12: memref<1x128xf32, #tpu.memory_space<vmem>>, %arg13: memref<1x128xf32, #tpu.memory_space<vmem>>, %arg14: memref<1x256xf32, #tpu.memory_space<vmem>>, %arg15: memref<1x128xf32, #tpu.memory_space<vmem>>, %arg16: memref<1x16x128xf32, #tpu.memory_space<vmem>>, %arg17: memref<2x24x256xbf16, #tpu.memory_space<vmem>>) attributes {dimension_semantics = [#tpu.dimension_semantics<parallel>, #tpu.dimension_semantics<parallel>], iteration_bounds = array<i64: 2, 2>, scalar_prefetch = 0 : i64, scratch_operands = 1 : i64, tpu.core_type = #tpu.core_type<tc>, window_params = [{transform_indices = @transform_0, window_bounds = array<i64: 3>}, {transform_indices = @transform_1, window_bounds = array<i64: 1, 16, 128>}, {transform_indices = @transform_2, window_bounds = array<i64: 1, 1, 48, 64>}, {pipeline_mode = #tpu.pipeline_mode<synchronous>, transform_indices = @transform_3, window_bounds = array<i64: 128, 128>}, {pipeline_mode = #tpu.pipeline_mode<synchronous>, transform_indices = @transform_4, window_bounds = array<i64: 64, 256>}, {pipeline_mode = #tpu.pipeline_mode<synchronous>, transform_indices = @transform_5, window_bounds = array<i64: 128, 128>}, {pipeline_mode = #tpu.pipeline_mode<synchronous>, transform_indices = @transform_6, window_bounds = array<i64: 128, 128>}, {pipeline_mode = #tpu.pipeline_mode<synchronous>, transform_indices = @transform_7, window_bounds = array<i64: 128, 128>}, {pipeline_mode = #tpu.pipeline_mode<synchronous>, transform_indices = @transform_8, window_bounds = array<i64: 128, 256>}, {pipeline_mode = #tpu.pipeline_mode<synchronous>, transform_indices = @transform_9, window_bounds = array<i64: 256, 128>}, {pipeline_mode = #tpu.pipeline_mode<synchronous>, transform_indices = @transform_10, window_bounds = array<i64: 1, 128>}, {pipeline_mode = #tpu.pipeline_mode<synchronous>, transform_indices = @transform_11, window_bounds = array<i64: 1, 128>}, {pipeline_mode = #tpu.pipeline_mode<synchronous>, transform_indices = @transform_12, window_bounds = array<i64: 1, 256>}, {pipeline_mode = #tpu.pipeline_mode<synchronous>, transform_indices = @transform_13, window_bounds = array<i64: 1, 128>}, {transform_indices = @transform_14, window_bounds = array<i64: 1, 16, 128>}]} {
    %c0 = arith.constant 0 : index
    %c0_0 = arith.constant 0 : index
    %c0_1 = arith.constant 0 : index
    %0 = vector.load %arg3[%c0, %c0_0, %c0_1] : memref<1x16x128xf32, #tpu.memory_space<vmem>>, vector<1x16x128xf32>
    %1 = vector.shape_cast %0 : vector<1x16x128xf32> to vector<16x128xf32>
    %c0_2 = arith.constant 0 : index
    %c0_3 = arith.constant 0 : index
    %2 = vector.load %arg12[%c0_2, %c0_3] : memref<1x128xf32, #tpu.memory_space<vmem>>, vector<1x128xf32>
    %c0_4 = arith.constant 0 : index
    %c0_5 = arith.constant 0 : index
    %3 = vector.load %arg13[%c0_4, %c0_5] : memref<1x128xf32, #tpu.memory_space<vmem>>, vector<1x128xf32>
    %cst = arith.constant dense<0.000000e+00> : vector<16xf32>
    %4 = vector.multi_reduction <add>, %1, %cst [1] : vector<16x128xf32> to vector<16xf32>
    %5 = vector.shape_cast %4 : vector<16xf32> to vector<16x1xf32>
    %cst_6 = arith.constant 1.280000e+02 : f32
    %6 = vector.broadcast %cst_6 : f32 to vector<16x1xf32>
    %7 = arith.divf %5, %6 : vector<16x1xf32>
    %8 = vector.broadcast %7 : vector<16x1xf32> to vector<16x128xf32>
    %9 = arith.subf %1, %8 : vector<16x128xf32>
    %10 = vector.broadcast %7 : vector<16x1xf32> to vector<16x128xf32>
    %11 = arith.subf %1, %10 : vector<16x128xf32>
    %12 = arith.mulf %9, %11 : vector<16x128xf32>
    %cst_7 = arith.constant dense<0.000000e+00> : vector<16xf32>
    %13 = vector.multi_reduction <add>, %12, %cst_7 [1] : vector<16x128xf32> to vector<16xf32>
    %14 = vector.shape_cast %13 : vector<16xf32> to vector<16x1xf32>
    %cst_8 = arith.constant 1.280000e+02 : f32
    %15 = vector.broadcast %cst_8 : f32 to vector<16x1xf32>
    %16 = arith.divf %14, %15 : vector<16x1xf32>
    %17 = vector.broadcast %7 : vector<16x1xf32> to vector<16x128xf32>
    %18 = arith.subf %1, %17 : vector<16x128xf32>
    %cst_9 = arith.constant 9.99999974E-6 : f32
    %19 = vector.broadcast %cst_9 : f32 to vector<16x1xf32>
    %20 = arith.addf %16, %19 : vector<16x1xf32>
    %21 = math.rsqrt %20 : vector<16x1xf32>
    %22 = vector.broadcast %21 : vector<16x1xf32> to vector<16x128xf32>
    %23 = arith.mulf %18, %22 : vector<16x128xf32>
    %24 = vector.broadcast %2 : vector<1x128xf32> to vector<16x128xf32>
    %25 = arith.mulf %23, %24 : vector<16x128xf32>
    %26 = vector.broadcast %3 : vector<1x128xf32> to vector<16x128xf32>
    %27 = arith.addf %25, %26 : vector<16x128xf32>
    %28 = arith.truncf %27 : vector<16x128xf32> to vector<16x128xbf16>
    %c0_10 = arith.constant 0 : index
    %c0_11 = arith.constant 0 : index
    %29 = vector.load %arg5[%c0_10, %c0_11] : memref<128x128xbf16, #tpu.memory_space<vmem>>, vector<128x128xbf16>
    %cst_12 = arith.constant dense<0.000000e+00> : vector<16x128xf32>
    %30 = tpu.matmul %28, %29, %cst_12 {dimension_numbers = #tpu.dot_dimension_numbers<[1], [0], [0], [1], [0, 0, 1, 1], [], []>} : vector<16x128xbf16>, vector<128x128xbf16>, vector<16x128xf32> -> vector<16x128xf32>
    %c0_13 = arith.constant 0 : index
    %c0_14 = arith.constant 0 : index
    %31 = vector.load %arg7[%c0_13, %c0_14] : memref<128x128xbf16, #tpu.memory_space<vmem>>, vector<128x128xbf16>
    %32 = arith.truncf %30 : vector<16x128xf32> to vector<16x128xbf16>
    %cst_15 = arith.constant dense<0.000000e+00> : vector<16x128xf32>
    %33 = tpu.matmul %32, %31, %cst_15 {dimension_numbers = #tpu.dot_dimension_numbers<[1], [0], [0], [1], [0, 0, 1, 1], [], []>} : vector<16x128xbf16>, vector<128x128xbf16>, vector<16x128xf32> -> vector<16x128xf32>
    %c0_16 = arith.constant 0 : index
    %c0_17 = arith.constant 0 : index
    %34 = vector.load %arg6[%c0_16, %c0_17] : memref<64x256xbf16, #tpu.memory_space<vmem>>, vector<64x256xbf16>
    %c0_18 = arith.constant 0 : index
    %c0_19 = arith.constant 0 : index
    %c0_20 = arith.constant 0 : index
    %c0_21 = arith.constant 0 : index
    %35 = vector.load %arg4[%c0_18, %c0_19, %c0_20, %c0_21] : memref<1x1x48x64xbf16, #tpu.memory_space<vmem>>, vector<1x1x24x64xbf16>
    %36 = vector.shape_cast %35 : vector<1x1x24x64xbf16> to vector<24x64xbf16>
    %cst_22 = arith.constant dense<0.000000e+00> : vector<24x256xf32>
    %37 = tpu.matmul %36, %34, %cst_22 {dimension_numbers = #tpu.dot_dimension_numbers<[1], [0], [0], [1], [0, 0, 1, 1], [], []>} : vector<24x64xbf16>, vector<64x256xbf16>, vector<24x256xf32> -> vector<24x256xf32>
    %38 = arith.truncf %37 : vector<24x256xf32> to vector<24x256xbf16>
    %c0_23 = arith.constant 0 : index
    %c0_24 = arith.constant 0 : index
    %c0_25 = arith.constant 0 : index
    %39 = vector.load %arg17[%c0_23, %c0_24, %c0_25] : memref<2x24x256xbf16, #tpu.memory_space<vmem>>, vector<1x24x256xbf16>
    %40 = vector.shape_cast %39 : vector<1x24x256xbf16> to vector<24x256xbf16>
    %41 = vector.shape_cast %38 : vector<24x256xbf16> to vector<1x24x256xbf16>
    tpu.vector_store %arg17[%c0_23, %c0_24, %c0_25], %41 {strides = array<i32>} : memref<2x24x256xbf16, #tpu.memory_space<vmem>>, vector<1x24x256xbf16>,
    %c0_26 = arith.constant 0 : index
    %c0_27 = arith.constant 0 : index
    %c24 = arith.constant 24 : index
    %c0_28 = arith.constant 0 : index
    %42 = vector.load %arg4[%c0_26, %c0_27, %c24, %c0_28] : memref<1x1x48x64xbf16, #tpu.memory_space<vmem>>, vector<1x1x24x64xbf16>
    %43 = vector.shape_cast %42 : vector<1x1x24x64xbf16> to vector<24x64xbf16>
    %cst_29 = arith.constant dense<0.000000e+00> : vector<24x256xf32>
    %44 = tpu.matmul %43, %34, %cst_29 {dimension_numbers = #tpu.dot_dimension_numbers<[1], [0], [0], [1], [0, 0, 1, 1], [], []>} : vector<24x64xbf16>, vector<64x256xbf16>, vector<24x256xf32> -> vector<24x256xf32>
    %45 = arith.truncf %44 : vector<24x256xf32> to vector<24x256xbf16>
    %c1 = arith.constant 1 : index
    %c0_30 = arith.constant 0 : index
    %c0_31 = arith.constant 0 : index
    %46 = vector.load %arg17[%c1, %c0_30, %c0_31] : memref<2x24x256xbf16, #tpu.memory_space<vmem>>, vector<1x24x256xbf16>
    %47 = vector.shape_cast %46 : vector<1x24x256xbf16> to vector<24x256xbf16>
    %48 = vector.shape_cast %45 : vector<24x256xbf16> to vector<1x24x256xbf16>
    tpu.vector_store %arg17[%c1, %c0_30, %c0_31], %48 {strides = array<i32>} : memref<2x24x256xbf16, #tpu.memory_space<vmem>>, vector<1x24x256xbf16>,
    %c16_i32 = arith.constant 16 : i32
    %49 = arith.muli %arg1, %c16_i32 : i32
    %50 = tpu.iota {dimensions = array<i32: 0>} : vector<16x1xi32>
    %51 = vector.broadcast %49 : i32 to vector<16x1xi32>
    %52 = arith.addi %51, %50 : vector<16x1xi32>
    %c0_32 = arith.constant 0 : index
    %c0_33 = arith.constant 0 : index
    %c0_34 = arith.constant 0 : index
    %53 = vector.load %arg17[%c0_32, %c0_33, %c0_34] : memref<2x24x256xbf16, #tpu.memory_space<vmem>>, vector<1x16x128xbf16>
    %54 = vector.shape_cast %53 : vector<1x16x128xbf16> to vector<16x128xbf16>
    %55 = arith.extf %54 : vector<16x128xbf16> to vector<16x128xf32>
    %56 = arith.mulf %30, %55 : vector<16x128xf32>
    %57 = arith.truncf %56 : vector<16x128xf32> to vector<16x128xbf16>
    %cst_35 = arith.constant dense<0.000000e+00> : vector<16x128xf32>
    %58 = tpu.matmul %57, %31, %cst_35 {dimension_numbers = #tpu.dot_dimension_numbers<[1], [0], [0], [1], [0, 0, 1, 1], [], []>} : vector<16x128xbf16>, vector<128x128xbf16>, vector<16x128xf32> -> vector<16x128xf32>
    %c0_36 = arith.constant 0 : index
    %59 = memref.load %arg2[%c0_36] : memref<3xf32, #tpu.memory_space<smem>>
    %60 = vector.broadcast %59 : f32 to vector<16x128xf32>
    %61 = arith.mulf %60, %33 : vector<16x128xf32>
    %62 = arith.addf %58, %61 : vector<16x128xf32>
    %c1_i32 = arith.constant 1 : i32
    %63 = vector.broadcast %c1_i32 : i32 to vector<16x1xi32>
    %64 = arith.cmpi sge, %52, %63 : vector<16x1xi32>
    %cst_37 = arith.constant -1.000000e+30 : f32
    %65 = vector.shape_cast %64 : vector<16x1xi1> to vector<16x1xi1>
    %66 = vector.broadcast %65 : vector<16x1xi1> to vector<16x128xi1>
    %67 = vector.broadcast %cst_37 : f32 to vector<16x128xf32>
    %68 = arith.select %66, %62, %67 : vector<16x128xi1>, vector<16x128xf32>
    %c1_38 = arith.constant 1 : index
    %c0_39 = arith.constant 0 : index
    %c0_40 = arith.constant 0 : index
    %69 = vector.load %arg17[%c1_38, %c0_39, %c0_40] : memref<2x24x256xbf16, #tpu.memory_space<vmem>>, vector<1x16x128xbf16>
    %70 = vector.shape_cast %69 : vector<1x16x128xbf16> to vector<16x128xbf16>
    %71 = arith.extf %70 : vector<16x128xbf16> to vector<16x128xf32>
    %72 = arith.mulf %30, %71 : vector<16x128xf32>
    %73 = arith.truncf %72 : vector<16x128xf32> to vector<16x128xbf16>
    %cst_41 = arith.constant dense<0.000000e+00> : vector<16x128xf32>
    %74 = tpu.matmul %73, %31, %cst_41 {dimension_numbers = #tpu.dot_dimension_numbers<[1], [0], [0], [1], [0, 0, 1, 1], [], []>} : vector<16x128xbf16>, vector<128x128xbf16>, vector<16x128xf32> -> vector<16x128xf32>
    %c1_42 = arith.constant 1 : index
    %75 = memref.load %arg2[%c1_42] : memref<3xf32, #tpu.memory_space<smem>>
    %76 = vector.broadcast %75 : f32 to vector<16x128xf32>
    %77 = arith.mulf %76, %33 : vector<16x128xf32>
    %78 = arith.addf %74, %77 : vector<16x128xf32>
    %c1_i32_43 = arith.constant 1 : i32
    %79 = vector.broadcast %c1_i32_43 : i32 to vector<16x1xi32>
    %80 = arith.cmpi sge, %52, %79 : vector<16x1xi32>
    %cst_44 = arith.constant -1.000000e+30 : f32
    %81 = vector.shape_cast %80 : vector<16x1xi1> to vector<16x1xi1>
    %82 = vector.broadcast %81 : vector<16x1xi1> to vector<16x128xi1>
    %83 = vector.broadcast %cst_44 : f32 to vector<16x128xf32>
    %84 = arith.select %82, %78, %83 : vector<16x128xi1>, vector<16x128xf32>
    %c0_45 = arith.constant 0 : index
    %c1_46 = arith.constant 1 : index
    %c0_47 = arith.constant 0 : index
    %85 = vector.load %arg17[%c0_45, %c1_46, %c0_47] : memref<2x24x256xbf16, #tpu.memory_space<vmem>>, vector<1x16x128xbf16>
    %86 = vector.shape_cast %85 : vector<1x16x128xbf16> to vector<16x128xbf16>
    %87 = arith.extf %86 : vector<16x128xbf16> to vector<16x128xf32>
    %88 = arith.mulf %30, %87 : vector<16x128xf32>
    %89 = arith.truncf %88 : vector<16x128xf32> to vector<16x128xbf16>
    %cst_48 = arith.constant dense<0.000000e+00> : vector<16x128xf32>
    %90 = tpu.matmul %89, %31, %cst_48 {dimension_numbers = #tpu.dot_dimension_numbers<[1], [0], [0], [1], [0, 0, 1, 1], [], []>} : vector<16x128xbf16>, vector<128x128xbf16>, vector<16x128xf32> -> vector<16x128xf32>
    %c2 = arith.constant 2 : index
    %91 = memref.load %arg2[%c2] : memref<3xf32, #tpu.memory_space<smem>>
    %92 = vector.broadcast %91 : f32 to vector<16x128xf32>
    %93 = arith.mulf %92, %33 : vector<16x128xf32>
    %94 = arith.addf %90, %93 : vector<16x128xf32>
    %95 = arith.maximumf %68, %84 : vector<16x128xf32>
    %96 = arith.maximumf %95, %94 : vector<16x128xf32>
    %97 = arith.subf %68, %96 : vector<16x128xf32>
    %98 = math.exp %97 : vector<16x128xf32>
    %99 = arith.subf %84, %96 : vector<16x128xf32>
    %100 = math.exp %99 : vector<16x128xf32>
    %101 = arith.subf %94, %96 : vector<16x128xf32>
    %102 = math.exp %101 : vector<16x128xf32>
    %103 = arith.addf %98, %100 : vector<16x128xf32>
    %104 = arith.addf %103, %102 : vector<16x128xf32>
    %cst_49 = arith.constant 1.000000e+00 : f32
    %105 = vector.broadcast %cst_49 : f32 to vector<16x128xf32>
    %106 = arith.divf %105, %104 : vector<16x128xf32>
    %c0_50 = arith.constant 0 : index
    %c0_51 = arith.constant 0 : index
    %107 = vector.load %arg8[%c0_50, %c0_51] : memref<128x128xbf16, #tpu.memory_space<vmem>>, vector<128x128xbf16>
    %108 = arith.mulf %98, %106 : vector<16x128xf32>
    %109 = arith.truncf %108 : vector<16x128xf32> to vector<16x128xbf16>
    %cst_52 = arith.constant dense<0.000000e+00> : vector<16x128xf32>
    %110 = tpu.matmul %109, %107, %cst_52 {dimension_numbers = #tpu.dot_dimension_numbers<[1], [0], [0], [1], [0, 0, 1, 1], [], []>} : vector<16x128xbf16>, vector<128x128xbf16>, vector<16x128xf32> -> vector<16x128xf32>
    %c0_53 = arith.constant 0 : index
    %c0_54 = arith.constant 0 : index
    %c128 = arith.constant 128 : index
    %111 = vector.load %arg17[%c0_53, %c0_54, %c128] : memref<2x24x256xbf16, #tpu.memory_space<vmem>>, vector<1x16x128xbf16>
    %112 = vector.shape_cast %111 : vector<1x16x128xbf16> to vector<16x128xbf16>
    %113 = arith.extf %112 : vector<16x128xbf16> to vector<16x128xf32>
    %114 = arith.mulf %110, %113 : vector<16x128xf32>
    %c0_55 = arith.constant 0 : index
    %115 = memref.load %arg2[%c0_55] : memref<3xf32, #tpu.memory_space<smem>>
    %116 = vector.broadcast %115 : f32 to vector<16x128xf32>
    %117 = arith.mulf %116, %108 : vector<16x128xf32>
    %118 = arith.mulf %100, %106 : vector<16x128xf32>
    %119 = arith.truncf %118 : vector<16x128xf32> to vector<16x128xbf16>
    %cst_56 = arith.constant dense<0.000000e+00> : vector<16x128xf32>
    %120 = tpu.matmul %119, %107, %cst_56 {dimension_numbers = #tpu.dot_dimension_numbers<[1], [0], [0], [1], [0, 0, 1, 1], [], []>} : vector<16x128xbf16>, vector<128x128xbf16>, vector<16x128xf32> -> vector<16x128xf32>
    %c1_57 = arith.constant 1 : index
    %c0_58 = arith.constant 0 : index
    %c128_59 = arith.constant 128 : index
    %121 = vector.load %arg17[%c1_57, %c0_58, %c128_59] : memref<2x24x256xbf16, #tpu.memory_space<vmem>>, vector<1x16x128xbf16>
    %122 = vector.shape_cast %121 : vector<1x16x128xbf16> to vector<16x128xbf16>
    %123 = arith.extf %122 : vector<16x128xbf16> to vector<16x128xf32>
    %124 = arith.mulf %120, %123 : vector<16x128xf32>
    %125 = arith.addf %114, %124 : vector<16x128xf32>
    %c1_60 = arith.constant 1 : index
    %126 = memref.load %arg2[%c1_60] : memref<3xf32, #tpu.memory_space<smem>>
    %127 = vector.broadcast %126 : f32 to vector<16x128xf32>
    %128 = arith.mulf %127, %118 : vector<16x128xf32>
    %129 = arith.addf %117, %128 : vector<16x128xf32>
    %130 = arith.mulf %102, %106 : vector<16x128xf32>
    %131 = arith.truncf %130 : vector<16x128xf32> to vector<16x128xbf16>
    %cst_61 = arith.constant dense<0.000000e+00> : vector<16x128xf32>
    %132 = tpu.matmul %131, %107, %cst_61 {dimension_numbers = #tpu.dot_dimension_numbers<[1], [0], [0], [1], [0, 0, 1, 1], [], []>} : vector<16x128xbf16>, vector<128x128xbf16>, vector<16x128xf32> -> vector<16x128xf32>
    %c0_62 = arith.constant 0 : index
    %c1_63 = arith.constant 1 : index
    %c128_64 = arith.constant 128 : index
    %133 = vector.load %arg17[%c0_62, %c1_63, %c128_64] : memref<2x24x256xbf16, #tpu.memory_space<vmem>>, vector<1x16x128xbf16>
    %134 = vector.shape_cast %133 : vector<1x16x128xbf16> to vector<16x128xbf16>
    %135 = arith.extf %134 : vector<16x128xbf16> to vector<16x128xf32>
    %136 = arith.mulf %132, %135 : vector<16x128xf32>
    %137 = arith.addf %125, %136 : vector<16x128xf32>
    %c2_65 = arith.constant 2 : index
    %138 = memref.load %arg2[%c2_65] : memref<3xf32, #tpu.memory_space<smem>>
    %139 = vector.broadcast %138 : f32 to vector<16x128xf32>
    %140 = arith.mulf %139, %130 : vector<16x128xf32>
    %141 = arith.addf %129, %140 : vector<16x128xf32>
    %142 = arith.truncf %141 : vector<16x128xf32> to vector<16x128xbf16>
    %cst_66 = arith.constant dense<0.000000e+00> : vector<16x128xf32>
    %143 = tpu.matmul %142, %107, %cst_66 {dimension_numbers = #tpu.dot_dimension_numbers<[1], [0], [0], [1], [0, 0, 1, 1], [], []>} : vector<16x128xbf16>, vector<128x128xbf16>, vector<16x128xf32> -> vector<16x128xf32>
    %144 = arith.addf %137, %143 : vector<16x128xf32>
    %145 = arith.truncf %144 : vector<16x128xf32> to vector<16x128xbf16>
    %c0_67 = arith.constant 0 : index
    %c0_68 = arith.constant 0 : index
    %146 = vector.load %arg9[%c0_67, %c0_68] : memref<128x128xbf16, #tpu.memory_space<vmem>>, vector<128x128xbf16>
    %cst_69 = arith.constant dense<0.000000e+00> : vector<16x128xf32>
    %147 = tpu.matmul %145, %146, %cst_69 {dimension_numbers = #tpu.dot_dimension_numbers<[1], [0], [0], [1], [0, 0, 1, 1], [], []>} : vector<16x128xbf16>, vector<128x128xbf16>, vector<16x128xf32> -> vector<16x128xf32>
    %148 = arith.addf %147, %1 : vector<16x128xf32>
    %cst_70 = arith.constant dense<0.000000e+00> : vector<16xf32>
    %149 = vector.multi_reduction <add>, %148, %cst_70 [1] : vector<16x128xf32> to vector<16xf32>
    %150 = vector.shape_cast %149 : vector<16xf32> to vector<16x1xf32>
    %cst_71 = arith.constant 1.280000e+02 : f32
    %151 = vector.broadcast %cst_71 : f32 to vector<16x1xf32>
    %152 = arith.divf %150, %151 : vector<16x1xf32>
    %153 = vector.broadcast %152 : vector<16x1xf32> to vector<16x128xf32>
    %154 = arith.subf %148, %153 : vector<16x128xf32>
    %155 = vector.broadcast %152 : vector<16x1xf32> to vector<16x128xf32>
    %156 = arith.subf %148, %155 : vector<16x128xf32>
    %157 = arith.mulf %154, %156 : vector<16x128xf32>
    %cst_72 = arith.constant dense<0.000000e+00> : vector<16xf32>
    %158 = vector.multi_reduction <add>, %157, %cst_72 [1] : vector<16x128xf32> to vector<16xf32>
    %159 = vector.shape_cast %158 : vector<16xf32> to vector<16x1xf32>
    %cst_73 = arith.constant 1.280000e+02 : f32
    %160 = vector.broadcast %cst_73 : f32 to vector<16x1xf32>
    %161 = arith.divf %159, %160 : vector<16x1xf32>
    %162 = vector.broadcast %152 : vector<16x1xf32> to vector<16x128xf32>
    %163 = arith.subf %148, %162 : vector<16x128xf32>
    %cst_74 = arith.constant 9.99999974E-6 : f32
    %164 = vector.broadcast %cst_74 : f32 to vector<16x1xf32>
    %165 = arith.addf %161, %164 : vector<16x1xf32>
    %166 = math.rsqrt %165 : vector<16x1xf32>
    %167 = vector.broadcast %166 : vector<16x1xf32> to vector<16x128xf32>
    %168 = arith.mulf %163, %167 : vector<16x128xf32>
    %169 = vector.broadcast %2 : vector<1x128xf32> to vector<16x128xf32>
    %170 = arith.mulf %168, %169 : vector<16x128xf32>
    %171 = vector.broadcast %3 : vector<1x128xf32> to vector<16x128xf32>
    %172 = arith.addf %170, %171 : vector<16x128xf32>
    %173 = arith.truncf %172 : vector<16x128xf32> to vector<16x128xbf16>
    %c0_75 = arith.constant 0 : index
    %c0_76 = arith.constant 0 : index
    %174 = vector.load %arg10[%c0_75, %c0_76] : memref<128x256xbf16, #tpu.memory_space<vmem>>, vector<128x256xbf16>
    %cst_77 = arith.constant dense<0.000000e+00> : vector<16x256xf32>
    %175 = tpu.matmul %173, %174, %cst_77 {dimension_numbers = #tpu.dot_dimension_numbers<[1], [0], [0], [1], [0, 0, 1, 1], [], []>} : vector<16x128xbf16>, vector<128x256xbf16>, vector<16x256xf32> -> vector<16x256xf32>
    %c0_78 = arith.constant 0 : index
    %c0_79 = arith.constant 0 : index
    %176 = vector.load %arg14[%c0_78, %c0_79] : memref<1x256xf32, #tpu.memory_space<vmem>>, vector<1x256xf32>
    %177 = vector.broadcast %176 : vector<1x256xf32> to vector<16x256xf32>
    %178 = arith.addf %175, %177 : vector<16x256xf32>
    %cst_80 = arith.constant 5.000000e-01 : f32
    %179 = vector.broadcast %cst_80 : f32 to vector<16x256xf32>
    %180 = arith.mulf %179, %178 : vector<16x256xf32>
    %cst_81 = arith.constant 4.471500e-02 : f32
    %181 = vector.broadcast %cst_81 : f32 to vector<16x256xf32>
    %182 = arith.mulf %181, %178 : vector<16x256xf32>
    %183 = arith.mulf %182, %178 : vector<16x256xf32>
    %184 = arith.mulf %183, %178 : vector<16x256xf32>
    %185 = arith.addf %178, %184 : vector<16x256xf32>
    %cst_82 = arith.constant 0.797884583 : f32
    %186 = vector.broadcast %cst_82 : f32 to vector<16x256xf32>
    %187 = arith.mulf %186, %185 : vector<16x256xf32>
    %188 = math.tanh %187 : vector<16x256xf32>
    %cst_83 = arith.constant 1.000000e+00 : f32
    %189 = vector.broadcast %cst_83 : f32 to vector<16x256xf32>
    %190 = arith.addf %189, %188 : vector<16x256xf32>
    %191 = arith.mulf %180, %190 : vector<16x256xf32>
    %192 = arith.truncf %191 : vector<16x256xf32> to vector<16x256xbf16>
    %c0_84 = arith.constant 0 : index
    %c0_85 = arith.constant 0 : index
    %193 = vector.load %arg11[%c0_84, %c0_85] : memref<256x128xbf16, #tpu.memory_space<vmem>>, vector<256x128xbf16>
    %cst_86 = arith.constant dense<0.000000e+00> : vector<16x128xf32>
    %194 = tpu.matmul %192, %193, %cst_86 {dimension_numbers = #tpu.dot_dimension_numbers<[1], [0], [0], [1], [0, 0, 1, 1], [], []>} : vector<16x256xbf16>, vector<256x128xbf16>, vector<16x128xf32> -> vector<16x128xf32>
    %c0_87 = arith.constant 0 : index
    %c0_88 = arith.constant 0 : index
    %195 = vector.load %arg15[%c0_87, %c0_88] : memref<1x128xf32, #tpu.memory_space<vmem>>, vector<1x128xf32>
    %196 = vector.broadcast %195 : vector<1x128xf32> to vector<16x128xf32>
    %197 = arith.addf %194, %196 : vector<16x128xf32>
    %198 = arith.addf %197, %148 : vector<16x128xf32>
    %c0_89 = arith.constant 0 : index
    %c0_90 = arith.constant 0 : index
    %c0_91 = arith.constant 0 : index
    %199 = vector.load %arg16[%c0_89, %c0_90, %c0_91] : memref<1x16x128xf32, #tpu.memory_space<vmem>>, vector<1x16x128xf32>
    %200 = vector.shape_cast %199 : vector<1x16x128xf32> to vector<16x128xf32>
    %201 = vector.shape_cast %198 : vector<16x128xf32> to vector<1x16x128xf32>
    tpu.vector_store %arg16[%c0_89, %c0_90, %c0_91], %201 {strides = array<i32>} : memref<1x16x128xf32, #tpu.memory_space<vmem>>, vector<1x16x128xf32>,
    return
  }
  func.func @transform_0(%arg0: i32, %arg1: i32) -> i32 {
    %c0_i32 = arith.constant 0 : i32
    %c0_i32_0 = arith.constant 0 : i32
    return %c0_i32 : i32
  }
  func.func @transform_1(%arg0: i32, %arg1: i32) -> (i32, i32, i32) {
    %c0_i32 = arith.constant 0 : i32
    %c0_i32_0 = arith.constant 0 : i32
    return %arg0, %arg1, %c0_i32 : i32, i32, i32
  }
  func.func @transform_2(%arg0: i32, %arg1: i32) -> (i32, i32, i32, i32) {
    %c0_i32 = arith.constant 0 : i32
    %c0_i32_0 = arith.constant 0 : i32
    %c0_i32_1 = arith.constant 0 : i32
    return %arg0, %arg1, %c0_i32, %c0_i32_0 : i32, i32, i32, i32
  }
  func.func @transform_3(%arg0: i32, %arg1: i32) -> (i32, i32) {
    %c0_i32 = arith.constant 0 : i32
    %c0_i32_0 = arith.constant 0 : i32
    %c0_i32_1 = arith.constant 0 : i32
    return %c0_i32, %c0_i32_0 : i32, i32
  }
  func.func @transform_4(%arg0: i32, %arg1: i32) -> (i32, i32) {
    %c0_i32 = arith.constant 0 : i32
    %c0_i32_0 = arith.constant 0 : i32
    %c0_i32_1 = arith.constant 0 : i32
    return %c0_i32, %c0_i32_0 : i32, i32
  }
  func.func @transform_5(%arg0: i32, %arg1: i32) -> (i32, i32) {
    %c0_i32 = arith.constant 0 : i32
    %c0_i32_0 = arith.constant 0 : i32
    %c0_i32_1 = arith.constant 0 : i32
    return %c0_i32, %c0_i32_0 : i32, i32
  }
  func.func @transform_6(%arg0: i32, %arg1: i32) -> (i32, i32) {
    %c0_i32 = arith.constant 0 : i32
    %c0_i32_0 = arith.constant 0 : i32
    %c0_i32_1 = arith.constant 0 : i32
    return %c0_i32, %c0_i32_0 : i32, i32
  }
  func.func @transform_7(%arg0: i32, %arg1: i32) -> (i32, i32) {
    %c0_i32 = arith.constant 0 : i32
    %c0_i32_0 = arith.constant 0 : i32
    %c0_i32_1 = arith.constant 0 : i32
    return %c0_i32, %c0_i32_0 : i32, i32
  }
  func.func @transform_8(%arg0: i32, %arg1: i32) -> (i32, i32) {
    %c0_i32 = arith.constant 0 : i32
    %c0_i32_0 = arith.constant 0 : i32
    %c0_i32_1 = arith.constant 0 : i32
    return %c0_i32, %c0_i32_0 : i32, i32
  }
  func.func @transform_9(%arg0: i32, %arg1: i32) -> (i32, i32) {
    %c0_i32 = arith.constant 0 : i32
    %c0_i32_0 = arith.constant 0 : i32
    %c0_i32_1 = arith.constant 0 : i32
    return %c0_i32, %c0_i32_0 : i32, i32
  }
  func.func @transform_10(%arg0: i32, %arg1: i32) -> (i32, i32) {
    %c0_i32 = arith.constant 0 : i32
    %c0_i32_0 = arith.constant 0 : i32
    %c0_i32_1 = arith.constant 0 : i32
    return %c0_i32, %c0_i32_0 : i32, i32
  }
  func.func @transform_11(%arg0: i32, %arg1: i32) -> (i32, i32) {
    %c0_i32 = arith.constant 0 : i32
    %c0_i32_0 = arith.constant 0 : i32
    %c0_i32_1 = arith.constant 0 : i32
    return %c0_i32, %c0_i32_0 : i32, i32
  }
  func.func @transform_12(%arg0: i32, %arg1: i32) -> (i32, i32) {
    %c0_i32 = arith.constant 0 : i32
    %c0_i32_0 = arith.constant 0 : i32
    %c0_i32_1 = arith.constant 0 : i32
    return %c0_i32, %c0_i32_0 : i32, i32
  }
  func.func @transform_13(%arg0: i32, %arg1: i32) -> (i32, i32) {
    %c0_i32 = arith.constant 0 : i32
    %c0_i32_0 = arith.constant 0 : i32
    %c0_i32_1 = arith.constant 0 : i32
    return %c0_i32, %c0_i32_0 : i32, i32
  }
  func.func @transform_14(%arg0: i32, %arg1: i32) -> (i32, i32, i32) {
    %c0_i32 = arith.constant 0 : i32
    %c0_i32_0 = arith.constant 0 : i32
    return %arg0, %arg1, %c0_i32 : i32, i32, i32
  }
}

</mosaic_0001>

<llo_original>
// kernel: sparse_cross_encoder_block.1
$region0: #{sparse_cross_encoder_block.1}
  #allocation0 [shape = 'u32[]', space=smem, size = 0x4, offset = 0x4, fixed_abs, tag = 'smem constant byte address 0x4 - core index']
  #allocation1 [shape = 'u32[144,128]{1,0:T(1,128)}', space=vmem, size = 0x12000, scoped, tag = 'internal scratch']
  #allocation2 [shape = 'bf16[2,24,256]{2,1,0:T(8,128)(2,1)}', space=vmem, size = 0x6000, scoped, tag = 'scratch operand']
  %s0 = inlined_call_operand.vmem [shape: f32[3], index: 0, kind: input, shape index: {}]
  %s1 = inlined_call_operand.vmem [shape: f32[2,32,128], index: 1, kind: input, shape index: {}]
  %s2 = inlined_call_operand.vmem [shape: bf16[2,2,48,64], index: 2, kind: input, shape index: {}]
  %s3 = inlined_call_operand.vmem [shape: bf16[128,128], index: 3, kind: input, shape index: {}]
  %s4 = inlined_call_operand.vmem [shape: bf16[64,256], index: 4, kind: input, shape index: {}]
  %s5 = inlined_call_operand.vmem [shape: bf16[128,128], index: 5, kind: input, shape index: {}]
  %s6 = inlined_call_operand.vmem [shape: bf16[128,128], index: 6, kind: input, shape index: {}]
  %s7 = inlined_call_operand.vmem [shape: bf16[128,128], index: 7, kind: input, shape index: {}]
  %s8 = inlined_call_operand.vmem [shape: bf16[128,256], index: 8, kind: input, shape index: {}]
  %s9 = inlined_call_operand.vmem [shape: bf16[256,128], index: 9, kind: input, shape index: {}]
  %s10 = inlined_call_operand.vmem [shape: f32[1,128], index: 10, kind: input, shape index: {}]
  %s11 = inlined_call_operand.vmem [shape: f32[1,128], index: 11, kind: input, shape index: {}]
  %s12 = inlined_call_operand.vmem [shape: f32[1,256], index: 12, kind: input, shape index: {}]
  %s13 = inlined_call_operand.vmem [shape: f32[1,128], index: 13, kind: input, shape index: {}]
  %s14 = inlined_call_operand.hbm [shape: f32[2,32,128], index: 14, kind: output, shape index: {}]
  %s15 = sld [smem:[#allocation0]]
  $region93: #{sparse_cross_encoder_block.1} parent=0
    _
  %s17 = ssub.s32 1, %s15
  %s18 = scalar_select 0, %s17, %s15
  $region1: #{sparse_cross_encoder_block.1} parent=0
    #allocation3 [shape = 'u8[512]{0}', space=smem, size = 0x200, scoped, tag = 'input window, operand 0, single buffered']
    #allocation4 [shape = 's32[2]{0}', space=sflag, size = 0x8, scoped, tag = 'scoped memory for sparse_cross_encoder_block.1']
    #allocation5 [shape = 's32[2]{0}', space=sflag, size = 0x8, scoped, tag = 'scoped memory for sparse_cross_encoder_block.1']
    #allocation6 [shape = 'u8[16384]{0}', space=vmem, size = 0x4000, scoped, tag = 'output window, operand 0']
    %19 = vsyncpa [#allocation5], 0
    %20 = vsyncpa [#allocation4], 0
    %s21 = scalar_lea.sflag [#allocation4], 1
    %22 = vsyncpa %s21, 0
    loop: start=0, step=1, limit=6
    $region2: #{sparse_cross_encoder_block.1} parent=1 // loop_pre_header
      _
    $region3: #{sparse_cross_encoder_block.1} parent=1 // loop_header
      %s24 = sphi 0, %s28
      %p25 = scmp.ge.s32.totalorder %s24, 6
      %s31 = sphi 0, %s43
      %s32 = sphi 0, %s39
      %s33 = sphi 0, %s31
      %s34 = sphi 0, %s32
      %s35 = sphi 0, %s33
      %s36 = sphi 0, %s34
      %s44 = sphi 0, %s44
      %s46 = sphi 0, %s44
      %s47 = sphi 0, %s46
      %s61 = sphi 0, %s47
      %s69 = sphi 0, %s71
      %s72 = sphi 0, %s69
      %s73 = sphi 0, %s72
      %s89 = sphi 0, %s73
      %s97 = sphi 0, %s99
      %s100 = sphi 0, %s97
      %s101 = sphi 0, %s100
      %s117 = sphi 0, %s101
      %s121 = sphi 0, %s121
      %s123 = sphi 0, %s121
      %s124 = sphi 0, %s123
      %s138 = sphi 0, %s124
      %s142 = sphi 0, %s142
      %s144 = sphi 0, %s142
      %s145 = sphi 0, %s144
      %s159 = sphi 0, %s145
      %s163 = sphi 0, %s163
      %s165 = sphi 0, %s163
      %s166 = sphi 0, %s165
      %s180 = sphi 0, %s166
      %s184 = sphi 0, %s184
      %s186 = sphi 0, %s184
      %s187 = sphi 0, %s186
      %s201 = sphi 0, %s187
      %s205 = sphi 0, %s205
      %s207 = sphi 0, %s205
      %s208 = sphi 0, %s207
      %s222 = sphi 0, %s208
      %s226 = sphi 0, %s226
      %s228 = sphi 0, %s226
      %s229 = sphi 0, %s228
      %s243 = sphi 0, %s229
      %s247 = sphi 0, %s247
      %s249 = sphi 0, %s247
      %s250 = sphi 0, %s249
      %s264 = sphi 0, %s250
      %s268 = sphi 0, %s268
      %s270 = sphi 0, %s268
      %s271 = sphi 0, %s270
      %s285 = sphi 0, %s271
      %s289 = sphi 0, %s289
      %s291 = sphi 0, %s289
      %s292 = sphi 0, %s291
      %s306 = sphi 0, %s292
      %s310 = sphi 0, %s310
      %s312 = sphi 0, %s310
      %s313 = sphi 0, %s312
      %s327 = sphi 0, %s313
      %s331 = sphi 0, %s331
      %s333 = sphi 0, %s331
      %s334 = sphi 0, %s333
      %s348 = sphi 0, %s334
      %s356 = sphi 0, %s358
      %s359 = sphi 0, %s356
      %s360 = sphi 0, %s359
      %s376 = sphi 0, %s360
    $region4: #{sparse_cross_encoder_block.1} parent=1 // loop_header_branch
      %27 = sbr.rel (%p25) target = $region8
    $region5: #{sparse_cross_encoder_block.1} parent=1 // loop_body
      %s29 = ssub.s32 %s24, 1
      %s30 = ssub.s32 %s24, 2
      %s37 = sadd.s32 1, %s32
      %p38 = scmp.ge.s32.totalorder %s37, 2
      %s39 = scalar_select %p38, 0, %s37
      %s40 = sadd.s32 1, %s31
      %s41 = scalar_select %p38, %s40, %s31
      %p42 = scmp.ge.s32.totalorder %s41, 2
      %s43 = scalar_select %p42, 0, %s41
      %s45 = sadd.s32 %s44, 1
      %p48 = scmp.eq.s32.totalorder %s24, 3
      %p49 = scmp.ne.s32.totalorder %s44, %s46
      %p50 = scmp.eq.s32.totalorder %s24, 0
      %p51 = por %p49, %p50
      %p52 = scmp.ne.s32.totalorder %s44, %s46
      %p53 = scmp.eq.s32.totalorder %s29, 3
      %p54 = por %p52, %p53
      %p55 = scmp.ne.s32.totalorder %s46, %s47
      %p56 = scmp.eq.s32.totalorder %s29, 0
      %p57 = por %p55, %p56
      %p58 = scmp.ne.s32.totalorder %s46, %s47
      %p59 = scmp.eq.s32.totalorder %s30, 3
      %p60 = por %p58, %p59
      %p62 = scmp.ne.s32.totalorder %s47, %s61
      %p63 = scmp.eq.s32.totalorder %s30, 0
      %p64 = por %p62, %p63
      %s65 = ssub.s32 %s31, %s43
      %s66 = ssub.s32 %s32, %s39
      %s67 = sor.u32 %s65, %s66
      %p68 = scmp.eq.s32.totalorder %s67, 0
      %s70 = sadd.s32 %s69, 1
      %s71 = scalar_select %p68, %s69, %s70
      %p74 = pneg %p68
      %p75 = scmp.eq.s32.totalorder %s24, 3
      %p76 = por %p74, %p75
      %p77 = scmp.ne.s32.totalorder %s69, %s72
      %p78 = scmp.eq.s32.totalorder %s24, 0
      %p79 = por %p77, %p78
      %p80 = scmp.ne.s32.totalorder %s69, %s72
      %p81 = scmp.eq.s32.totalorder %s29, 3
      %p82 = por %p80, %p81
      %p83 = scmp.ne.s32.totalorder %s72, %s73
      %p84 = scmp.eq.s32.totalorder %s29, 0
      %p85 = por %p83, %p84
      %p86 = scmp.ne.s32.totalorder %s72, %s73
      %p87 = scmp.eq.s32.totalorder %s30, 3
      %p88 = por %p86, %p87
      %p90 = scmp.ne.s32.totalorder %s73, %s89
      %p91 = scmp.eq.s32.totalorder %s30, 0
      %p92 = por %p90, %p91
      %s93 = ssub.s32 %s31, %s43
      %s94 = ssub.s32 %s32, %s39
      %s95 = sor.u32 %s93, %s94
      %p96 = scmp.eq.s32.totalorder %s95, 0
      %s98 = sadd.s32 %s97, 1
      %s99 = scalar_select %p96, %s97, %s98
      %p102 = pneg %p96
      %p103 = scmp.eq.s32.totalorder %s24, 3
      %p104 = por %p102, %p103
      %p105 = scmp.ne.s32.totalorder %s97, %s100
      %p106 = scmp.eq.s32.totalorder %s24, 0
      %p107 = por %p105, %p106
      %p108 = scmp.ne.s32.totalorder %s97, %s100
      %p109 = scmp.eq.s32.totalorder %s29, 3
      %p110 = por %p108, %p109
      %p111 = scmp.ne.s32.totalorder %s100, %s101
      %p112 = scmp.eq.s32.totalorder %s29, 0
      %p113 = por %p111, %p112
      %p114 = scmp.ne.s32.totalorder %s100, %s101
      %p115 = scmp.eq.s32.totalorder %s30, 3
      %p116 = por %p114, %p115
      %p118 = scmp.ne.s32.totalorder %s101, %s117
      %p119 = scmp.eq.s32.totalorder %s30, 0
      %p120 = por %p118, %p119
      %s122 = sadd.s32 %s121, 1
      %p125 = scmp.eq.s32.totalorder %s24, 3
      %p126 = scmp.ne.s32.totalorder %s121, %s123
      %p127 = scmp.eq.s32.totalorder %s24, 0
      %p128 = por %p126, %p127
      %p129 = scmp.ne.s32.totalorder %s121, %s123
      %p130 = scmp.eq.s32.totalorder %s29, 3
      %p131 = por %p129, %p130
      %p132 = scmp.ne.s32.totalorder %s123, %s124
      %p133 = scmp.eq.s32.totalorder %s29, 0
      %p134 = por %p132, %p133
      %p135 = scmp.ne.s32.totalorder %s123, %s124
      %p136 = scmp.eq.s32.totalorder %s30, 3
      %p137 = por %p135, %p136
      %p139 = scmp.ne.s32.totalorder %s124, %s138
      %p140 = scmp.eq.s32.totalorder %s30, 0
      %p141 = por %p139, %p140
      %s143 = sadd.s32 %s142, 1
      %p146 = scmp.eq.s32.totalorder %s24, 3
      %p147 = scmp.ne.s32.totalorder %s142, %s144
      %p148 = scmp.eq.s32.totalorder %s24, 0
      %p149 = por %p147, %p148
      %p150 = scmp.ne.s32.totalorder %s142, %s144
      %p151 = scmp.eq.s32.totalorder %s29, 3
      %p152 = por %p150, %p151
      %p153 = scmp.ne.s32.totalorder %s144, %s145
      %p154 = scmp.eq.s32.totalorder %s29, 0
      %p155 = por %p153, %p154
      %p156 = scmp.ne.s32.totalorder %s144, %s145
      %p157 = scmp.eq.s32.totalorder %s30, 3
      %p158 = por %p156, %p157
      %p160 = scmp.ne.s32.totalorder %s145, %s159
      %p161 = scmp.eq.s32.totalorder %s30, 0
      %p162 = por %p160, %p161
      %s164 = sadd.s32 %s163, 1
      %p167 = scmp.eq.s32.totalorder %s24, 3
      %p168 = scmp.ne.s32.totalorder %s163, %s165
      %p169 = scmp.eq.s32.totalorder %s24, 0
      %p170 = por %p168, %p169
      %p171 = scmp.ne.s32.totalorder %s163, %s165
      %p172 = scmp.eq.s32.totalorder %s29, 3
      %p173 = por %p171, %p172
      %p174 = scmp.ne.s32.totalorder %s165, %s166
      %p175 = scmp.eq.s32.totalorder %s29, 0
      %p176 = por %p174, %p175
      %p177 = scmp.ne.s32.totalorder %s165, %s166
      %p178 = scmp.eq.s32.totalorder %s30, 3
      %p179 = por %p177, %p178
      %p181 = scmp.ne.s32.totalorder %s166, %s180
      %p182 = scmp.eq.s32.totalorder %s30, 0
      %p183 = por %p181, %p182
      %s185 = sadd.s32 %s184, 1
      %p188 = scmp.eq.s32.totalorder %s24, 3
      %p189 = scmp.ne.s32.totalorder %s184, %s186
      %p190 = scmp.eq.s32.totalorder %s24, 0
      %p191 = por %p189, %p190
      %p192 = scmp.ne.s32.totalorder %s184, %s186
      %p193 = scmp.eq.s32.totalorder %s29, 3
      %p194 = por %p192, %p193
      %p195 = scmp.ne.s32.totalorder %s186, %s187
      %p196 = scmp.eq.s32.totalorder %s29, 0
      %p197 = por %p195, %p196
      %p198 = scmp.ne.s32.totalorder %s186, %s187
      %p199 = scmp.eq.s32.totalorder %s30, 3
      %p200 = por %p198, %p199
      %p202 = scmp.ne.s32.totalorder %s187, %s201
      %p203 = scmp.eq.s32.totalorder %s30, 0
      %p204 = por %p202, %p203
      %s206 = sadd.s32 %s205, 1
      %p209 = scmp.eq.s32.totalorder %s24, 3
      %p210 = scmp.ne.s32.totalorder %s205, %s207
      %p211 = scmp.eq.s32.totalorder %s24, 0
      %p212 = por %p210, %p211
      %p213 = scmp.ne.s32.totalorder %s205, %s207
      %p214 = scmp.eq.s32.totalorder %s29, 3
      %p215 = por %p213, %p214
      %p216 = scmp.ne.s32.totalorder %s207, %s208
      %p217 = scmp.eq.s32.totalorder %s29, 0
      %p218 = por %p216, %p217
      %p219 = scmp.ne.s32.totalorder %s207, %s208
      %p220 = scmp.eq.s32.totalorder %s30, 3
      %p221 = por %p219, %p220
      %p223 = scmp.ne.s32.totalorder %s208, %s222
      %p224 = scmp.eq.s32.totalorder %s30, 0
      %p225 = por %p223, %p224
      %s227 = sadd.s32 %s226, 1
      %p230 = scmp.eq.s32.totalorder %s24, 3
      %p231 = scmp.ne.s32.totalorder %s226, %s228
      %p232 = scmp.eq.s32.totalorder %s24, 0
      %p233 = por %p231, %p232
      %p234 = scmp.ne.s32.totalorder %s226, %s228
      %p235 = scmp.eq.s32.totalorder %s29, 3
      %p236 = por %p234, %p235
      %p237 = scmp.ne.s32.totalorder %s228, %s229
      %p238 = scmp.eq.s32.totalorder %s29, 0
      %p239 = por %p237, %p238
      %p240 = scmp.ne.s32.totalorder %s228, %s229
      %p241 = scmp.eq.s32.totalorder %s30, 3
      %p242 = por %p240, %p241
      %p244 = scmp.ne.s32.totalorder %s229, %s243
      %p245 = scmp.eq.s32.totalorder %s30, 0
      %p246 = por %p244, %p245
      %s248 = sadd.s32 %s247, 1
      %p251 = scmp.eq.s32.totalorder %s24, 3
      %p252 = scmp.ne.s32.totalorder %s247, %s249
      %p253 = scmp.eq.s32.totalorder %s24, 0
      %p254 = por %p252, %p253
      %p255 = scmp.ne.s32.totalorder %s247, %s249
      %p256 = scmp.eq.s32.totalorder %s29, 3
      %p257 = por %p255, %p256
      %p258 = scmp.ne.s32.totalorder %s249, %s250
      %p259 = scmp.eq.s32.totalorder %s29, 0
      %p260 = por %p258, %p259
      %p261 = scmp.ne.s32.totalorder %s249, %s250
      %p262 = scmp.eq.s32.totalorder %s30, 3
      %p263 = por %p261, %p262
      %p265 = scmp.ne.s32.totalorder %s250, %s264
      %p266 = scmp.eq.s32.totalorder %s30, 0
      %p267 = por %p265, %p266
      %s269 = sadd.s32 %s268, 1
      %p272 = scmp.eq.s32.totalorder %s24, 3
      %p273 = scmp.ne.s32.totalorder %s268, %s270
      %p274 = scmp.eq.s32.totalorder %s24, 0
      %p275 = por %p273, %p274
      %p276 = scmp.ne.s32.totalorder %s268, %s270
      %p277 = scmp.eq.s32.totalorder %s29, 3
      %p278 = por %p276, %p277
      %p279 = scmp.ne.s32.totalorder %s270, %s271
      %p280 = scmp.eq.s32.totalorder %s29, 0
      %p281 = por %p279, %p280
      %p282 = scmp.ne.s32.totalorder %s270, %s271
      %p283 = scmp.eq.s32.totalorder %s30, 3
      %p284 = por %p282, %p283
      %p286 = scmp.ne.s32.totalorder %s271, %s285
      %p287 = scmp.eq.s32.totalorder %s30, 0
      %p288 = por %p286, %p287
      %s290 = sadd.s32 %s289, 1
      %p293 = scmp.eq.s32.totalorder %s24, 3
      %p294 = scmp.ne.s32.totalorder %s289, %s291
      %p295 = scmp.eq.s32.totalorder %s24, 0
      %p296 = por %p294, %p295
      %p297 = scmp.ne.s32.totalorder %s289, %s291
      %p298 = scmp.eq.s32.totalorder %s29, 3
      %p299 = por %p297, %p298
      %p300 = scmp.ne.s32.totalorder %s291, %s292
      %p301 = scmp.eq.s32.totalorder %s29, 0
      %p302 = por %p300, %p301
      %p303 = scmp.ne.s32.totalorder %s291, %s292
      %p304 = scmp.eq.s32.totalorder %s30, 3
      %p305 = por %p303, %p304
      %p307 = scmp.ne.s32.totalorder %s292, %s306
      %p308 = scmp.eq.s32.totalorder %s30, 0
      %p309 = por %p307, %p308
      %s311 = sadd.s32 %s310, 1
      %p314 = scmp.eq.s32.totalorder %s24, 3
      %p315 = scmp.ne.s32.totalorder %s310, %s312
      %p316 = scmp.eq.s32.totalorder %s24, 0
      %p317 = por %p315, %p316
      %p318 = scmp.ne.s32.totalorder %s310, %s312
      %p319 = scmp.eq.s32.totalorder %s29, 3
      %p320 = por %p318, %p319
      %p321 = scmp.ne.s32.totalorder %s312, %s313
      %p322 = scmp.eq.s32.totalorder %s29, 0
      %p323 = por %p321, %p322
      %p324 = scmp.ne.s32.totalorder %s312, %s313
      %p325 = scmp.eq.s32.totalorder %s30, 3
      %p326 = por %p324, %p325
      %p328 = scmp.ne.s32.totalorder %s313, %s327
      %p329 = scmp.eq.s32.totalorder %s30, 0
      %p330 = por %p328, %p329
      %s332 = sadd.s32 %s331, 1
      %p335 = scmp.eq.s32.totalorder %s24, 3
      %p336 = scmp.ne.s32.totalorder %s331, %s333
      %p337 = scmp.eq.s32.totalorder %s24, 0
      %p338 = por %p336, %p337
      %p339 = scmp.ne.s32.totalorder %s331, %s333
      %p340 = scmp.eq.s32.totalorder %s29, 3
      %p341 = por %p339, %p340
      %p342 = scmp.ne.s32.totalorder %s333, %s334
      %p343 = scmp.eq.s32.totalorder %s29, 0
      %p344 = por %p342, %p343
      %p345 = scmp.ne.s32.totalorder %s333, %s334
      %p346 = scmp.eq.s32.totalorder %s30, 3
      %p347 = por %p345, %p346
      %p349 = scmp.ne.s32.totalorder %s334, %s348
      %p350 = scmp.eq.s32.totalorder %s30, 0
      %p351 = por %p349, %p350
      %s352 = ssub.s32 %s31, %s43
      %s353 = ssub.s32 %s32, %s39
      %s354 = sor.u32 %s352, %s353
      %p355 = scmp.eq.s32.totalorder %s354, 0
      %s357 = sadd.s32 %s356, 1
      %s358 = scalar_select %p355, %s356, %s357
      %p361 = pneg %p355
      %p362 = scmp.eq.s32.totalorder %s24, 3
      %p363 = por %p361, %p362
      %p364 = scmp.ne.s32.totalorder %s356, %s359
      %p365 = scmp.eq.s32.totalorder %s24, 0
      %p366 = por %p364, %p365
      %p367 = scmp.ne.s32.totalorder %s356, %s359
      %p368 = scmp.eq.s32.totalorder %s29, 3
      %p369 = por %p367, %p368
      %p370 = scmp.ne.s32.totalorder %s359, %s360
      %p371 = scmp.eq.s32.totalorder %s29, 0
      %p372 = por %p370, %p371
      %p373 = scmp.ne.s32.totalorder %s359, %s360
      %p374 = scmp.eq.s32.totalorder %s30, 3
      %p375 = por %p373, %p374
      %p377 = scmp.ne.s32.totalorder %s360, %s376
      %p378 = scmp.eq.s32.totalorder %s30, 0
      %p379 = por %p377, %p378
      %p380 = scmp.le.s32.totalorder 1, %s24
      %p381 = scmp.lt.s32.totalorder %s24, 5
      %p382 = pnand %p380, %p381
      %p383 = pneg %p382
      // Predicated region
      $region9: #{sparse_cross_encoder_block.1} parent=5 // pred_check
        _
      $region10: #{sparse_cross_encoder_block.1} parent=5 // pred_check_branch
        %385 = sbr.rel (%p382) target = $region12
      $region11: #{sparse_cross_encoder_block.1} parent=5 // pred_region
        %s386 = ssub.s32 %s24, 1
        // Predicated region
        $region13: #{sparse_cross_encoder_block.1} parent=11 // pred_check
          %p387 = pneg %p57
        $region14: #{sparse_cross_encoder_block.1} parent=11 // pred_check_branch
          %389 = sbr.rel (%p387) target = $region16
        $region15: #{sparse_cross_encoder_block.1} parent=11 // pred_region
          %s391 = ssub.s32 16, 16
          %392 = vsyncadd [#allocation5], %s391
          %s394 = sshll.u32 %s0, 4
          %s395 = int_to_ptr.vmem [resolvable:$true] %s394
          %397 = dma.vmem_to_smem %s395, 16, [#allocation3], [#allocation5]
        $region16: #{sparse_cross_encoder_block.1} parent=11 // pred_fallthru
          _
        // Predicated region
        $region17: #{sparse_cross_encoder_block.1} parent=11 // pred_check
          %p398 = pneg %p134
        $region18: #{sparse_cross_encoder_block.1} parent=11 // pred_check_branch
          %400 = sbr.rel (%p398) target = $region20
        $region19: #{sparse_cross_encoder_block.1} parent=11 // pred_region
          _
        $region20: #{sparse_cross_encoder_block.1} parent=11 // pred_fallthru
          _
        // Predicated region
        $region21: #{sparse_cross_encoder_block.1} parent=11 // pred_check
          %p401 = pneg %p155
        $region22: #{sparse_cross_encoder_block.1} parent=11 // pred_check_branch
          %403 = sbr.rel (%p401) target = $region24
        $region23: #{sparse_cross_encoder_block.1} parent=11 // pred_region
          _
        $region24: #{sparse_cross_encoder_block.1} parent=11 // pred_fallthru
          _
        // Predicated region
        $region25: #{sparse_cross_encoder_block.1} parent=11 // pred_check
          %p404 = pneg %p176
        $region26: #{sparse_cross_encoder_block.1} parent=11 // pred_check_branch
          %406 = sbr.rel (%p404) target = $region28
        $region27: #{sparse_cross_encoder_block.1} parent=11 // pred_region
          _
        $region28: #{sparse_cross_encoder_block.1} parent=11 // pred_fallthru
          _
        // Predicated region
        $region29: #{sparse_cross_encoder_block.1} parent=11 // pred_check
          %p407 = pneg %p197
        $region30: #{sparse_cross_encoder_block.1} parent=11 // pred_check_branch
          %409 = sbr.rel (%p407) target = $region32
        $region31: #{sparse_cross_encoder_block.1} parent=11 // pred_region
          _
        $region32: #{sparse_cross_encoder_block.1} parent=11 // pred_fallthru
          _
        // Predicated region
        $region33: #{sparse_cross_encoder_block.1} parent=11 // pred_check
          %p410 = pneg %p218
        $region34: #{sparse_cross_encoder_block.1} parent=11 // pred_check_branch
          %412 = sbr.rel (%p410) target = $region36
        $region35: #{sparse_cross_encoder_block.1} parent=11 // pred_region
          _
        $region36: #{sparse_cross_encoder_block.1} parent=11 // pred_fallthru
          _
        // Predicated region
        $region37: #{sparse_cross_encoder_block.1} parent=11 // pred_check
          %p413 = pneg %p239
        $region38: #{sparse_cross_encoder_block.1} parent=11 // pred_check_branch
          %415 = sbr.rel (%p413) target = $region40
        $region39: #{sparse_cross_encoder_block.1} parent=11 // pred_region
          _
        $region40: #{sparse_cross_encoder_block.1} parent=11 // pred_fallthru
          _
        // Predicated region
        $region41: #{sparse_cross_encoder_block.1} parent=11 // pred_check
          %p416 = pneg %p260
        $region42: #{sparse_cross_encoder_block.1} parent=11 // pred_check_branch
          %418 = sbr.rel (%p416) target = $region44
        $region43: #{sparse_cross_encoder_block.1} parent=11 // pred_region
          _
        $region44: #{sparse_cross_encoder_block.1} parent=11 // pred_fallthru
          _
        // Predicated region
        $region45: #{sparse_cross_encoder_block.1} parent=11 // pred_check
          %p419 = pneg %p281
        $region46: #{sparse_cross_encoder_block.1} parent=11 // pred_check_branch
          %421 = sbr.rel (%p419) target = $region48
        $region47: #{sparse_cross_encoder_block.1} parent=11 // pred_region
          _
        $region48: #{sparse_cross_encoder_block.1} parent=11 // pred_fallthru
          _
        // Predicated region
        $region49: #{sparse_cross_encoder_block.1} parent=11 // pred_check
          %p422 = pneg %p302
        $region50: #{sparse_cross_encoder_block.1} parent=11 // pred_check_branch
          %424 = sbr.rel (%p422) target = $region52
        $region51: #{sparse_cross_encoder_block.1} parent=11 // pred_region
          _
        $region52: #{sparse_cross_encoder_block.1} parent=11 // pred_fallthru
          _
        // Predicated region
        $region53: #{sparse_cross_encoder_block.1} parent=11 // pred_check
          %p425 = pneg %p323
        $region54: #{sparse_cross_encoder_block.1} parent=11 // pred_check_branch
          %427 = sbr.rel (%p425) target = $region56
        $region55: #{sparse_cross_encoder_block.1} parent=11 // pred_region
          _
        $region56: #{sparse_cross_encoder_block.1} parent=11 // pred_fallthru
          _
        // Predicated region
        $region57: #{sparse_cross_encoder_block.1} parent=11 // pred_check
          %p428 = pneg %p344
        $region58: #{sparse_cross_encoder_block.1} parent=11 // pred_check_branch
          %430 = sbr.rel (%p428) target = $region60
        $region59: #{sparse_cross_encoder_block.1} parent=11 // pred_region
          _
        $region60: #{sparse_cross_encoder_block.1} parent=11 // pred_fallthru
          _
      $region12: #{sparse_cross_encoder_block.1} parent=5 // pred_fallthru
        _
      %p431 = scmp.lt.s32.totalorder %s24, 4
      // Predicated region
      $region61: #{sparse_cross_encoder_block.1} parent=5 // pred_check
        %p432 = pneg %p431
      $region62: #{sparse_cross_encoder_block.1} parent=5 // pred_check_branch
        %434 = sbr.rel (%p432) target = $region64
      $region63: #{sparse_cross_encoder_block.1} parent=5 // pred_region
        // Predicated region
        $region65: #{sparse_cross_encoder_block.1} parent=63 // pred_check
          %p435 = pneg %p79
        $region66: #{sparse_cross_encoder_block.1} parent=63 // pred_check_branch
          %437 = sbr.rel (%p435) target = $region68
        $region67: #{sparse_cross_encoder_block.1} parent=63 // pred_region
          %s438 = smul.u32 2, %s32
          %p439 = scmp.lt.s32.totalorder %s31, 1
          %s440 = scalar_select %p439, %s31, 1
          %p441 = scmp.lt.s32.totalorder %s438, 3
          %s442 = scalar_select %p441, %s438, 3
          %s443 = smul.addr %s440, 4
          %s444 = sadd.s32 %s442, %s443
          %s445 = smul.addr %s444, 8
          %s446 = scalar_lea.vmem %s1, %s445
          %s447 = smul.u32 2, %s32
        $region68: #{sparse_cross_encoder_block.1} parent=63 // pred_fallthru
          _
        // Predicated region
        $region69: #{sparse_cross_encoder_block.1} parent=63 // pred_check
          %p448 = pneg %p107
        $region70: #{sparse_cross_encoder_block.1} parent=63 // pred_check_branch
          %450 = sbr.rel (%p448) target = $region72
        $region71: #{sparse_cross_encoder_block.1} parent=63 // pred_region
          %p451 = scmp.lt.s32.totalorder %s31, 1
          %s452 = scalar_select %p451, %s31, 1
          %p453 = scmp.lt.s32.totalorder %s32, 1
          %s454 = scalar_select %p453, %s32, 1
          %s455 = smul.addr %s454, 6
          %s456 = smul.addr %s452, 12
          %s457 = sadd.s32 %s455, %s456
          %s458 = smul.addr %s457, 4
          %s459 = scalar_lea.vmem %s2, %s458
        $region72: #{sparse_cross_encoder_block.1} parent=63 // pred_fallthru
          _
      $region64: #{sparse_cross_encoder_block.1} parent=5 // pred_fallthru
        _
      %p460 = scmp.le.s32.totalorder 1, %s24
      %p461 = scmp.lt.s32.totalorder %s24, 5
      %p462 = pnand %p460, %p461
      %p463 = pneg %p462
      // Predicated region
      $region73: #{sparse_cross_encoder_block.1} parent=5 // pred_check
        _
      $region74: #{sparse_cross_encoder_block.1} parent=5 // pred_check_branch
        %465 = sbr.rel (%p462) target = $region76
      $region75: #{sparse_cross_encoder_block.1} parent=5 // pred_region
        %s466 = ssub.s32 %s24, 1
        // Predicated region
        $region77: #{sparse_cross_encoder_block.1} parent=75 // pred_check
          %p467 = pneg %p57
        $region78: #{sparse_cross_encoder_block.1} parent=75 // pred_check_branch
          %469 = sbr.rel (%p467) target = $region80
        $region79: #{sparse_cross_encoder_block.1} parent=75 // pred_region
          %470 = dma.done [#allocation5], 16
        $region80: #{sparse_cross_encoder_block.1} parent=75 // pred_fallthru
          _
        %471 = sfence
        %p472 = pneg %p57
        %p473 = pneg %p54
        %s474 = smul.u32 2, %s34
        %p475 = scmp.lt.s32.totalorder %s33, 1
        %s476 = scalar_select %p475, %s33, 1
        %p477 = scmp.lt.s32.totalorder %s474, 3
        %s478 = scalar_select %p477, %s474, 3
        %s479 = smul.addr %s476, 4
        %s480 = sadd.s32 %s478, %s479
        %s481 = smul.addr %s480, 8
        %s482 = scalar_lea.vmem %s1, %s481
        %p483 = pneg %p85
        %p484 = pneg %p82
        %p485 = scmp.lt.s32.totalorder %s33, 1
        %s486 = scalar_select %p485, %s33, 1
        %p487 = scmp.lt.s32.totalorder %s34, 1
        %s488 = scalar_select %p487, %s34, 1
        %s489 = smul.addr %s488, 6
        %s490 = smul.addr %s486, 12
        %s491 = sadd.s32 %s489, %s490
        %s492 = smul.addr %s491, 4
        %s493 = scalar_lea.vmem %s2, %s492
        %p494 = pneg %p113
        %p495 = pneg %p110
        %p496 = pneg %p134
        %p497 = pneg %p131
        %p498 = pneg %p155
        %p499 = pneg %p152
        %p500 = pneg %p176
        %p501 = pneg %p173
        %p502 = pneg %p197
        %p503 = pneg %p194
        %p504 = pneg %p218
        %p505 = pneg %p215
        %p506 = pneg %p239
        %p507 = pneg %p236
        %p508 = pneg %p260
        %p509 = pneg %p257
        %p510 = pneg %p281
        %p511 = pneg %p278
        %p512 = pneg %p302
        %p513 = pneg %p299
        %p514 = pneg %p323
        %p515 = pneg %p320
        %p516 = pneg %p344
        %p517 = pneg %p341
        %p518 = pneg %p372
        %p519 = pneg %p369
        %s520 = sand.u32 %s359, 1
        %s521 = scalar_lea.sflag [#allocation4], %s520
        %s522 = sand.u32 %s359, 1
        %s523 = smul.addr %s522, 16
        %s524 = scalar_lea.vmem [#allocation6], %s523
        %s525 = smul.u32 2, %s34
        %p526 = scmp.lt.s32.totalorder %s33, 1
        %s527 = scalar_select %p526, %s33, 1
        %p528 = scmp.lt.s32.totalorder %s525, 3
        %s529 = scalar_select %p528, %s525, 3
        %s530 = smul.addr %s527, 4
        %s531 = sadd.s32 %s529, %s530
        %s532 = smul.addr %s531, 8
        %s533 = scalar_lea.vmem %s1, %s532
        %s534 = smul.u32 2, %s34
        %p535 = scmp.lt.s32.totalorder %s33, 1
        %s536 = scalar_select %p535, %s33, 1
        %p537 = scmp.lt.s32.totalorder %s34, 1
        %s538 = scalar_select %p537, %s34, 1
        %s539 = smul.addr %s538, 6
        %s540 = smul.addr %s536, 12
        %s541 = sadd.s32 %s539, %s540
        %s542 = smul.addr %s541, 4
        %s543 = scalar_lea.vmem %s2, %s542
        %s544 = smul.u32 2, %s34
        %v546 = vld [vmem:[%s533] sm:$0xff]
        %v547 = vld [vmem:[%s533 + $0x8] sm:$0xff]
        %v548 = vld [vmem:[%s10] sm:$0x1]
        %v549 = vld [vmem:[%s11] sm:$0x1]
        %550 = vadd.xlane.f32.xlu0 %v546
        %v551 = vpop.xlane.xlu0 %550
        %552 = vadd.xlane.f32.xlu0 %v547
        %v553 = vpop.xlane.xlu0 %552
        %v554 = vrcp.pop 128.0
        %v555 = vmul.f32 %v551, %v554
        %v556 = vmul.f32 %v553, %v554
        %v557 = vsub.f32 %v546, %v555
        %v558 = vsub.f32 %v547, %v556
        %v559 = vmul.f32 %v557, %v557
        %v560 = vmul.f32 %v558, %v558
        %561 = vadd.xlane.f32.xlu0 %v559
        %v562 = vpop.xlane.xlu0 %561
        %563 = vadd.xlane.f32.xlu0 %v560
        %v564 = vpop.xlane.xlu0 %563
        %v565 = vmul.f32 %v562, %v554
        %v566 = vmul.f32 %v564, %v554
        %v567 = vadd.f32 %v565, 1e-05
        %v568 = vadd.f32 %v566, 1e-05
        %v569 = vrsqrt.pop %v567
        %v570 = vrsqrt.pop %v568
        %v571 = vmul.f32 %v557, %v569
        %v572 = vmul.f32 %v558, %v570
        %v574 = vlaneseq
        %v575 = vshrl.u32 %v574, 7
        %v576 = vsub.s32 0, %v575
        %v577 = vrot.slane %v548, %v576
        %v579 = vmul.f32 %v571, %v577
        %v580 = vmul.f32 %v572, %v577
        %v582 = vlaneseq
        %v583 = vshrl.u32 %v582, 7
        %v584 = vsub.s32 0, %v583
        %v585 = vrot.slane %v549, %v584
        %v587 = vadd.f32 %v579, %v585
        %v588 = vadd.f32 %v580, %v585
        %v589 = vpack.c.bf16 %v588, %v587
        %v590 = vld [vmem:[%s3] sm:$0xf]
        %v591 = vld [vmem:[%s3 + $0x4] sm:$0xf]
        %v592 = vld [vmem:[%s3 + $0x8] sm:$0xf]
        %v593 = vld [vmem:[%s3 + $0xc] sm:$0xf]
        %v594 = vld [vmem:[%s3 + $0x10] sm:$0xf]
        %v595 = vld [vmem:[%s3 + $0x14] sm:$0xf]
        %v596 = vld [vmem:[%s3 + $0x18] sm:$0xf]
        %v597 = vld [vmem:[%s3 + $0x1c] sm:$0xf]
        %v598 = vld [vmem:[%s3 + $0x20] sm:$0xf]
        %v599 = vld [vmem:[%s3 + $0x24] sm:$0xf]
        %v600 = vld [vmem:[%s3 + $0x28] sm:$0xf]
        %v601 = vld [vmem:[%s3 + $0x2c] sm:$0xf]
        %v602 = vld [vmem:[%s3 + $0x30] sm:$0xf]
        %v603 = vld [vmem:[%s3 + $0x34] sm:$0xf]
        %v604 = vld [vmem:[%s3 + $0x38] sm:$0xf]
        %v605 = vld [vmem:[%s3 + $0x3c] sm:$0xf]
        %v622 = vunpack.c.l.b16 %v590
        %v623 = vunpack.c.l.b16 %v591
        %v624 = vunpack.c.l.b16 %v592
        %v625 = vunpack.c.l.b16 %v593
        %v626 = vunpack.c.l.b16 %v594
        %v627 = vunpack.c.l.b16 %v595
        %v628 = vunpack.c.l.b16 %v596
        %v629 = vunpack.c.l.b16 %v597
        %v630 = vunpack.c.l.b16 %v598
        %v631 = vunpack.c.l.b16 %v599
        %v632 = vunpack.c.l.b16 %v600
        %v633 = vunpack.c.l.b16 %v601
        %v634 = vunpack.c.l.b16 %v602
        %v635 = vunpack.c.l.b16 %v603
        %v636 = vunpack.c.l.b16 %v604
        %v637 = vunpack.c.l.b16 %v605
        %v638 = vpack.c.b16 %v623, %v622
        %v639 = vpack.c.b16 %v625, %v624
        %v640 = vpack.c.b16 %v627, %v626
        %v641 = vpack.c.b16 %v629, %v628
        %v642 = vpack.c.b16 %v631, %v630
        %v643 = vpack.c.b16 %v633, %v632
        %v644 = vpack.c.b16 %v635, %v634
        %v645 = vpack.c.b16 %v637, %v636
        %654 = vmatprep.subr.bf16.mxu0 0
        %655 = vmatpush1.bf16.msra.mxu0 %v645
        %656 = vmatprep.subr.bf16.mxu0 0
        %657 = vmatpush1.bf16.msra.mxu0 %v644
        %658 = vmatprep.subr.bf16.mxu0 0
        %659 = vmatpush1.bf16.msra.mxu0 %v643
        %660 = vmatprep.subr.bf16.mxu0 0
        %661 = vmatpush1.bf16.msra.mxu0 %v642
        %662 = vmatprep.subr.bf16.mxu0 0
        %663 = vmatpush1.bf16.msra.mxu0 %v641
        %664 = vmatprep.subr.bf16.mxu0 0
        %665 = vmatpush1.bf16.msra.mxu0 %v640
        %666 = vmatprep.subr.bf16.mxu0 0
        %667 = vmatpush1.bf16.msra.mxu0 %v639
        %668 = vmatprep.subr.bf16.mxu0 0
        %669 = vmatpush1.bf16.msra.mxu0 %v638
        %670 = vmatprep.subr.bf16.mxu0 0
        %671 = vmatpush2.bf16.msra.mxu0 0
        %672 = vmatprep.subr.bf16.mxu0 0
        %673 = vmatpush2.bf16.msra.mxu0 0
        %674 = vmatprep.subr.bf16.mxu0 0
        %675 = vmatpush2.bf16.msra.mxu0 0
        %676 = vmatprep.subr.bf16.mxu0 0
        %677 = vmatpush2.bf16.msra.mxu0 0
        %678 = vmatprep.subr.bf16.mxu0 0
        %679 = vmatpush2.bf16.msra.mxu0 0
        %680 = vmatprep.subr.bf16.mxu0 0
        %681 = vmatpush2.bf16.msra.mxu0 0
        %682 = vmatprep.subr.bf16.mxu0 0
        %683 = vmatpush2.bf16.msra.mxu0 0
        %684 = vmatprep.subr.bf16.mxu0 0
        %685 = vmatpush2.bf16.msra.mxu0 0
        %686 = vmatprep.mubr.bf16.mxu0 0
        %687 = vmatmul.mubr.bf16.gmra.mxu0 %v589
        %v688 = vpop.f32.mrf.mxu0
        %v689 = vadd.f32 0.0, %v688
        %v690 = vpop.f32.mrf.mxu0
        %v691 = vpop.f32.mrf.mxu0
        %v692 = vadd.f32 0.0, %v691
        %v693 = vpop.f32.mrf.mxu0
        %694 = vdwg.mxu0
        %v695 = vld [vmem:[%s5] sm:$0xf]
        %v696 = vld [vmem:[%s5 + $0x4] sm:$0xf]
        %v697 = vld [vmem:[%s5 + $0x8] sm:$0xf]
        %v698 = vld [vmem:[%s5 + $0xc] sm:$0xf]
        %v699 = vld [vmem:[%s5 + $0x10] sm:$0xf]
        %v700 = vld [vmem:[%s5 + $0x14] sm:$0xf]
        %v701 = vld [vmem:[%s5 + $0x18] sm:$0xf]
        %v702 = vld [vmem:[%s5 + $0x1c] sm:$0xf]
        %v703 = vld [vmem:[%s5 + $0x20] sm:$0xf]
        %v704 = vld [vmem:[%s5 + $0x24] sm:$0xf]
        %v705 = vld [vmem:[%s5 + $0x28] sm:$0xf]
        %v706 = vld [vmem:[%s5 + $0x2c] sm:$0xf]
        %v707 = vld [vmem:[%s5 + $0x30] sm:$0xf]
        %v708 = vld [vmem:[%s5 + $0x34] sm:$0xf]
        %v709 = vld [vmem:[%s5 + $0x38] sm:$0xf]
        %v710 = vld [vmem:[%s5 + $0x3c] sm:$0xf]
        %v711 = vpack.c.bf16 %v692, %v689
        %v728 = vunpack.c.l.b16 %v695
        %v729 = vunpack.c.l.b16 %v696
        %v730 = vunpack.c.l.b16 %v697
        %v731 = vunpack.c.l.b16 %v698
        %v732 = vunpack.c.l.b16 %v699
        %v733 = vunpack.c.l.b16 %v700
        %v734 = vunpack.c.l.b16 %v701
        %v735 = vunpack.c.l.b16 %v702
        %v736 = vunpack.c.l.b16 %v703
        %v737 = vunpack.c.l.b16 %v704
        %v738 = vunpack.c.l.b16 %v705
        %v739 = vunpack.c.l.b16 %v706
        %v740 = vunpack.c.l.b16 %v707
        %v741 = vunpack.c.l.b16 %v708
        %v742 = vunpack.c.l.b16 %v709
        %v743 = vunpack.c.l.b16 %v710
        %v744 = vpack.c.b16 %v729, %v728
        %v745 = vpack.c.b16 %v731, %v730
        %v746 = vpack.c.b16 %v733, %v732
        %v747 = vpack.c.b16 %v735, %v734
        %v748 = vpack.c.b16 %v737, %v736
        %v749 = vpack.c.b16 %v739, %v738
        %v750 = vpack.c.b16 %v741, %v740
        %v751 = vpack.c.b16 %v743, %v742
        %760 = vmatprep.subr.bf16.mxu0 0
        %761 = vmatpush1.bf16.msra.mxu0 %v751
        %762 = vmatprep.subr.bf16.mxu0 0
        %763 = vmatpush1.bf16.msra.mxu0 %v750
        %764 = vmatprep.subr.bf16.mxu0 0
        %765 = vmatpush1.bf16.msra.mxu0 %v749
        %766 = vmatprep.subr.bf16.mxu0 0
        %767 = vmatpush1.bf16.msra.mxu0 %v748
        %768 = vmatprep.subr.bf16.mxu0 0
        %769 = vmatpush1.bf16.msra.mxu0 %v747
        %770 = vmatprep.subr.bf16.mxu0 0
        %771 = vmatpush1.bf16.msra.mxu0 %v746
        %772 = vmatprep.subr.bf16.mxu0 0
        %773 = vmatpush1.bf16.msra.mxu0 %v745
        %774 = vmatprep.subr.bf16.mxu0 0
        %775 = vmatpush1.bf16.msra.mxu0 %v744
        %776 = vmatprep.subr.bf16.mxu0 0
        %777 = vmatpush2.bf16.msra.mxu0 0
        %778 = vmatprep.subr.bf16.mxu0 0
        %779 = vmatpush2.bf16.msra.mxu0 0
        %780 = vmatprep.subr.bf16.mxu0 0
        %781 = vmatpush2.bf16.msra.mxu0 0
        %782 = vmatprep.subr.bf16.mxu0 0
        %783 = vmatpush2.bf16.msra.mxu0 0
        %784 = vmatprep.subr.bf16.mxu0 0
        %785 = vmatpush2.bf16.msra.mxu0 0
        %786 = vmatprep.subr.bf16.mxu0 0
        %787 = vmatpush2.bf16.msra.mxu0 0
        %788 = vmatprep.subr.bf16.mxu0 0
        %789 = vmatpush2.bf16.msra.mxu0 0
        %790 = vmatprep.subr.bf16.mxu0 0
        %791 = vmatpush2.bf16.msra.mxu0 0
        %792 = vmatprep.mubr.bf16.mxu0 0
        %793 = vmatmul.mubr.bf16.gmra.mxu0 %v711
        %v794 = vpop.f32.mrf.mxu0
        %v795 = vadd.f32 0.0, %v794
        %v796 = vpop.f32.mrf.mxu0
        %v797 = vpop.f32.mrf.mxu0
        %v798 = vadd.f32 0.0, %v797
        %v799 = vpop.f32.mrf.mxu0
        %800 = vdwg.mxu0
        %v801 = vld [vmem:[%s4] sm:$0xff]
        %v802 = vld [vmem:[%s4 + $0x8] sm:$0xff]
        %v803 = vld [vmem:[%s4 + $0x10] sm:$0xff]
        %v804 = vld [vmem:[%s4 + $0x18] sm:$0xff]
        %v805 = vld [vmem:[%s4 + $0x20] sm:$0xff]
        %v806 = vld [vmem:[%s4 + $0x28] sm:$0xff]
        %v807 = vld [vmem:[%s4 + $0x30] sm:$0xff]
        %v808 = vld [vmem:[%s4 + $0x38] sm:$0xff]
        %v809 = vld [vmem:[%s543] sm:$0xf]
        %v810 = vld [vmem:[%s543 + $0x4] sm:$0xf]
        %v811 = vld [vmem:[%s543 + $0x8] sm:$0xf]
        %v815 = vunpack.c.l.b16 %v809
        %v816 = vunpack.c.l.b16 %v810
        %v817 = vunpack.c.l.b16 %v811
        %v818 = vpack.c.b16 %v816, %v815
        %v819 = vpack.c.b16 %v817, %v817
        %v828 = vunpack.c.l.b16 %v801
        %v829 = vunpack.c.h.b16 %v801
        %v830 = vunpack.c.l.b16 %v802
        %v831 = vunpack.c.h.b16 %v802
        %v832 = vunpack.c.l.b16 %v803
        %v833 = vunpack.c.h.b16 %v803
        %v834 = vunpack.c.l.b16 %v804
        %v835 = vunpack.c.h.b16 %v804
        %v836 = vunpack.c.l.b16 %v805
        %v837 = vunpack.c.h.b16 %v805
        %v838 = vunpack.c.l.b16 %v806
        %v839 = vunpack.c.h.b16 %v806
        %v840 = vunpack.c.l.b16 %v807
        %v841 = vunpack.c.h.b16 %v807
        %v842 = vunpack.c.l.b16 %v808
        %v843 = vunpack.c.h.b16 %v808
        %v844 = vpack.c.b16 %v830, %v828
        %v845 = vpack.c.b16 %v831, %v829
        %v846 = vpack.c.b16 %v834, %v832
        %v847 = vpack.c.b16 %v835, %v833
        %v848 = vpack.c.b16 %v838, %v836
        %v849 = vpack.c.b16 %v839, %v837
        %v850 = vpack.c.b16 %v842, %v840
        %v851 = vpack.c.b16 %v843, %v841
        %vm860 = vcmask 523264
        %v862 = vsel %vm860, %v818, 0
        %v865 = vsel %vm860, %v819, 0
        %867 = vmatprep.subr.bf16.mxu0 0
        %868 = vmatpush1.bf16.msra.mxu0 0
        %869 = vmatprep.subr.bf16.mxu0 0
        %870 = vmatpush1.bf16.msra.mxu0 0
        %871 = vmatprep.subr.bf16.mxu0 0
        %872 = vmatpush1.bf16.msra.mxu0 0
        %873 = vmatprep.subr.bf16.mxu0 0
        %874 = vmatpush1.bf16.msra.mxu0 0
        %875 = vmatprep.subr.bf16.mxu0 %v851
        %876 = vmatpush1.bf16.msra.mxu0 %v850
        %877 = vmatprep.subr.bf16.mxu0 %v849
        %878 = vmatpush1.bf16.msra.mxu0 %v848
        %879 = vmatprep.subr.bf16.mxu0 %v847
        %880 = vmatpush1.bf16.msra.mxu0 %v846
        %881 = vmatprep.subr.bf16.mxu0 %v845
        %882 = vmatpush1.bf16.msra.mxu0 %v844
        %883 = vmatprep.subr.bf16.mxu0 0
        %884 = vmatpush2.bf16.msra.mxu0 0
        %885 = vmatprep.subr.bf16.mxu0 0
        %886 = vmatpush2.bf16.msra.mxu0 0
        %887 = vmatprep.subr.bf16.mxu0 0
        %888 = vmatpush2.bf16.msra.mxu0 0
        %889 = vmatprep.subr.bf16.mxu0 0
        %890 = vmatpush2.bf16.msra.mxu0 0
        %891 = vmatprep.subr.bf16.mxu0 0
        %892 = vmatpush2.bf16.msra.mxu0 0
        %893 = vmatprep.subr.bf16.mxu0 0
        %894 = vmatpush2.bf16.msra.mxu0 0
        %895 = vmatprep.subr.bf16.mxu0 0
        %896 = vmatpush2.bf16.msra.mxu0 0
        %897 = vmatprep.subr.bf16.mxu0 0
        %898 = vmatpush2.bf16.msra.mxu0 0
        %899 = vmatprep.mubr.bf16.mxu0 0
        %900 = vmatmul.mubr.bf16.gmra.mxu0 %v862
        %v901 = vpop.f32.mrf.mxu0
        %v902 = vadd.f32 0.0, %v901
        %v903 = vpop.f32.mrf.mxu0
        %v904 = vadd.f32 0.0, %v903
        %v905 = vpop.f32.mrf.mxu0
        %v906 = vadd.f32 0.0, %v905
        %v907 = vpop.f32.mrf.mxu0
        %v908 = vadd.f32 0.0, %v907
        %909 = vmatprep.mubr.bf16.mxu0 0
        %910 = vmatmul.mubr.bf16.gmra.mxu0 %v865
        %v911 = vpop.f32.mrf.mxu0
        %v912 = vadd.f32 0.0, %v911
        %v913 = vpop.f32.mrf.mxu0
        %v914 = vadd.f32 0.0, %v913
        %v915 = vpop.f32.mrf.mxu0
        %v916 = vpop.f32.mrf.mxu0
        %917 = vdwg.mxu0
        %v918 = vpack.c.bf16 %v906, %v902
        %v919 = vpack.c.bf16 %v908, %v904
        %v920 = vpack.c.bf16 %v912, %v912
        %v921 = vpack.c.bf16 %v914, %v914
        %v926 = vunpack.c.l.b16 %v918
        %v927 = vunpack.c.l.b16 %v919
        %v928 = vunpack.c.h.b16 %v918
        %v929 = vunpack.c.h.b16 %v919
        %v930 = vunpack.c.l.b16 %v920
        %v931 = vunpack.c.l.b16 %v921
        %v932 = vpack.c.b16 %v927, %v926
        %v933 = vpack.c.b16 %v929, %v928
        %v934 = vpack.c.b16 %v931, %v930
        %938 = vst [vmem:[#allocation2] sm:$0xff] %v932
        %939 = vst [vmem:[#allocation2 + $0x8] sm:$0xff] %v933
        %940 = vst [vmem:[#allocation2 + $0x10] sm:$0xff] %v934
        %v941 = vld [vmem:[%s543 + $0xc] sm:$0xf]
        %v942 = vld [vmem:[%s543 + $0x10] sm:$0xf]
        %v943 = vld [vmem:[%s543 + $0x14] sm:$0xf]
        %v947 = vunpack.c.l.b16 %v941
        %v948 = vunpack.c.l.b16 %v942
        %v949 = vunpack.c.l.b16 %v943
        %v950 = vpack.c.b16 %v948, %v947
        %v951 = vpack.c.b16 %v949, %v949
        %v953 = vsel %vm860, %v950, 0
        %v956 = vsel %vm860, %v951, 0
        %958 = vmatprep.subr.bf16.mxu0 0
        %959 = vmatpush1.bf16.msra.mxu0 0
        %960 = vmatprep.subr.bf16.mxu0 0
        %961 = vmatpush1.bf16.msra.mxu0 0
        %962 = vmatprep.subr.bf16.mxu0 0
        %963 = vmatpush1.bf16.msra.mxu0 0
        %964 = vmatprep.subr.bf16.mxu0 0
        %965 = vmatpush1.bf16.msra.mxu0 0
        %966 = vmatprep.subr.bf16.mxu0 %v851
        %967 = vmatpush1.bf16.msra.mxu0 %v850
        %968 = vmatprep.subr.bf16.mxu0 %v849
        %969 = vmatpush1.bf16.msra.mxu0 %v848
        %970 = vmatprep.subr.bf16.mxu0 %v847
        %971 = vmatpush1.bf16.msra.mxu0 %v846
        %972 = vmatprep.subr.bf16.mxu0 %v845
        %973 = vmatpush1.bf16.msra.mxu0 %v844
        %974 = vmatprep.subr.bf16.mxu0 0
        %975 = vmatpush2.bf16.msra.mxu0 0
        %976 = vmatprep.subr.bf16.mxu0 0
        %977 = vmatpush2.bf16.msra.mxu0 0
        %978 = vmatprep.subr.bf16.mxu0 0
        %979 = vmatpush2.bf16.msra.mxu0 0
        %980 = vmatprep.subr.bf16.mxu0 0
        %981 = vmatpush2.bf16.msra.mxu0 0
        %982 = vmatprep.subr.bf16.mxu0 0
        %983 = vmatpush2.bf16.msra.mxu0 0
        %984 = vmatprep.subr.bf16.mxu0 0
        %985 = vmatpush2.bf16.msra.mxu0 0
        %986 = vmatprep.subr.bf16.mxu0 0
        %987 = vmatpush2.bf16.msra.mxu0 0
        %988 = vmatprep.subr.bf16.mxu0 0
        %989 = vmatpush2.bf16.msra.mxu0 0
        %990 = vmatprep.mubr.bf16.mxu0 0
        %991 = vmatmul.mubr.bf16.gmra.mxu0 %v953
        %v992 = vpop.f32.mrf.mxu0
        %v993 = vadd.f32 0.0, %v992
        %v994 = vpop.f32.mrf.mxu0
        %v995 = vadd.f32 0.0, %v994
        %v996 = vpop.f32.mrf.mxu0
        %v997 = vadd.f32 0.0, %v996
        %v998 = vpop.f32.mrf.mxu0
        %v999 = vadd.f32 0.0, %v998
        %1000 = vmatprep.mubr.bf16.mxu0 0
        %1001 = vmatmul.mubr.bf16.gmra.mxu0 %v956
        %v1002 = vpop.f32.mrf.mxu0
        %v1003 = vadd.f32 0.0, %v1002
        %v1004 = vpop.f32.mrf.mxu0
        %v1005 = vadd.f32 0.0, %v1004
        %v1006 = vpop.f32.mrf.mxu0
        %v1007 = vpop.f32.mrf.mxu0
        %1008 = vdwg.mxu0
        %v1009 = vpack.c.bf16 %v997, %v993
        %v1010 = vpack.c.bf16 %v999, %v995
        %v1011 = vpack.c.bf16 %v1003, %v1003
        %v1012 = vpack.c.bf16 %v1005, %v1005
        %v1017 = vunpack.c.l.b16 %v1009
        %v1018 = vunpack.c.l.b16 %v1010
        %v1019 = vunpack.c.h.b16 %v1009
        %v1020 = vunpack.c.h.b16 %v1010
        %v1021 = vunpack.c.l.b16 %v1011
        %v1022 = vunpack.c.l.b16 %v1012
        %v1023 = vpack.c.b16 %v1018, %v1017
        %v1024 = vpack.c.b16 %v1020, %v1019
        %v1025 = vpack.c.b16 %v1022, %v1021
        %s1029 = scalar_lea.vmem [#allocation2], 24
        %1030 = vst [vmem:[%s1029] sm:$0xff] %v1023
        %1031 = vst [vmem:[%s1029 + $0x8] sm:$0xff] %v1024
        %1032 = vst [vmem:[%s1029 + $0x10] sm:$0xff] %v1025
        %s1033 = smul.u32 %s34, 16
        %v1034 = vlaneseq
        %v1035 = vshrl.u32 %v1034, 7
        %v1036 = vadd.s32 %v1035, 8
        %v1037 = vstv %s1033
        %v1038 = vadd.s32 %v1037, %v1035
        %v1039 = vadd.s32 %v1037, %v1036
        %v1040 = vld [vmem:[#allocation2] sm:$0xf]
        %v1041 = vld [vmem:[#allocation2 + $0x8] sm:$0xf]
        %v1042 = vunpack.c.l.bf16 %v1040
        %v1043 = vunpack.c.l.bf16 %v1041
        %v1044 = vmul.f32 %v689, %v1042
        %v1045 = vmul.f32 %v692, %v1043
        %v1046 = vpack.c.bf16 %v1045, %v1044
        %s1047 = sld [smem:[#allocation3]]
        %v1048 = vstv %s1047
        %v1049 = vmul.f32 %v1048, %v795
        %v1050 = vmul.f32 %v1048, %v798
        %1051 = vmatprep.subr.bf16.mxu0 0
        %1052 = vmatpush1.bf16.msra.mxu0 %v751
        %1053 = vmatprep.subr.bf16.mxu0 0
        %1054 = vmatpush1.bf16.msra.mxu0 %v750
        %1055 = vmatprep.subr.bf16.mxu0 0
        %1056 = vmatpush1.bf16.msra.mxu0 %v749
        %1057 = vmatprep.subr.bf16.mxu0 0
        %1058 = vmatpush1.bf16.msra.mxu0 %v748
        %1059 = vmatprep.subr.bf16.mxu0 0
        %1060 = vmatpush1.bf16.msra.mxu0 %v747
        %1061 = vmatprep.subr.bf16.mxu0 0
        %1062 = vmatpush1.bf16.msra.mxu0 %v746
        %1063 = vmatprep.subr.bf16.mxu0 0
        %1064 = vmatpush1.bf16.msra.mxu0 %v745
        %1065 = vmatprep.subr.bf16.mxu0 0
        %1066 = vmatpush1.bf16.msra.mxu0 %v744
        %1067 = vmatprep.subr.bf16.mxu0 0
        %1068 = vmatpush2.bf16.msra.mxu0 0
        %1069 = vmatprep.subr.bf16.mxu0 0
        %1070 = vmatpush2.bf16.msra.mxu0 0
        %1071 = vmatprep.subr.bf16.mxu0 0
        %1072 = vmatpush2.bf16.msra.mxu0 0
        %1073 = vmatprep.subr.bf16.mxu0 0
        %1074 = vmatpush2.bf16.msra.mxu0 0
        %1075 = vmatprep.subr.bf16.mxu0 0
        %1076 = vmatpush2.bf16.msra.mxu0 0
        %1077 = vmatprep.subr.bf16.mxu0 0
        %1078 = vmatpush2.bf16.msra.mxu0 0
        %1079 = vmatprep.subr.bf16.mxu0 0
        %1080 = vmatpush2.bf16.msra.mxu0 0
        %1081 = vmatprep.subr.bf16.mxu0 0
        %1082 = vmatpush2.bf16.msra.mxu0 0
        %1083 = vmatprep.mubr.bf16.mxu0 0
        %1084 = vmatmul.mubr.bf16.gmra.mxu0 %v1046
        %v1085 = vpop.f32.mrf.mxu0
        %v1086 = vadd.f32 %v1049, %v1085
        %v1087 = vpop.f32.mrf.mxu0
        %v1088 = vpop.f32.mrf.mxu0
        %v1089 = vadd.f32 %v1050, %v1088
        %v1090 = vpop.f32.mrf.mxu0
        %1091 = vdwg.mxu0
        %vm1092 = vcmp.ge.s32.totalorder %v1038, 1
        %vm1093 = vcmp.ge.s32.totalorder %v1039, 1
        %v1094 = vsel %vm1092, 1, 0
        %v1095 = vsel %vm1093, 1, 0
        %vm1096 = vcmp.eq.s32.totalorder %v1094, 1
        %vm1097 = vcmp.eq.s32.totalorder %v1095, 1
        %v1098 = vsel %vm1096, %v1086, -1e+30
        %v1099 = vsel %vm1097, %v1089, -1e+30
        %v1100 = vld [vmem:[%s1029] sm:$0xf]
        %v1101 = vld [vmem:[%s1029 + $0x8] sm:$0xf]
        %v1102 = vunpack.c.l.bf16 %v1100
        %v1103 = vunpack.c.l.bf16 %v1101
        %v1104 = vmul.f32 %v689, %v1102
        %v1105 = vmul.f32 %v692, %v1103
        %v1106 = vpack.c.bf16 %v1105, %v1104
        %s1107 = sld [smem:[#allocation3 + $0x1]]
        %v1108 = vstv %s1107
        %v1109 = vmul.f32 %v1108, %v795
        %v1110 = vmul.f32 %v1108, %v798
        %1111 = vmatprep.subr.bf16.mxu0 0
        %1112 = vmatpush1.bf16.msra.mxu0 %v751
        %1113 = vmatprep.subr.bf16.mxu0 0
        %1114 = vmatpush1.bf16.msra.mxu0 %v750
        %1115 = vmatprep.subr.bf16.mxu0 0
        %1116 = vmatpush1.bf16.msra.mxu0 %v749
        %1117 = vmatprep.subr.bf16.mxu0 0
        %1118 = vmatpush1.bf16.msra.mxu0 %v748
        %1119 = vmatprep.subr.bf16.mxu0 0
        %1120 = vmatpush1.bf16.msra.mxu0 %v747
        %1121 = vmatprep.subr.bf16.mxu0 0
        %1122 = vmatpush1.bf16.msra.mxu0 %v746
        %1123 = vmatprep.subr.bf16.mxu0 0
        %1124 = vmatpush1.bf16.msra.mxu0 %v745
        %1125 = vmatprep.subr.bf16.mxu0 0
        %1126 = vmatpush1.bf16.msra.mxu0 %v744
        %1127 = vmatprep.subr.bf16.mxu0 0
        %1128 = vmatpush2.bf16.msra.mxu0 0
        %1129 = vmatprep.subr.bf16.mxu0 0
        %1130 = vmatpush2.bf16.msra.mxu0 0
        %1131 = vmatprep.subr.bf16.mxu0 0
        %1132 = vmatpush2.bf16.msra.mxu0 0
        %1133 = vmatprep.subr.bf16.mxu0 0
        %1134 = vmatpush2.bf16.msra.mxu0 0
        %1135 = vmatprep.subr.bf16.mxu0 0
        %1136 = vmatpush2.bf16.msra.mxu0 0
        %1137 = vmatprep.subr.bf16.mxu0 0
        %1138 = vmatpush2.bf16.msra.mxu0 0
        %1139 = vmatprep.subr.bf16.mxu0 0
        %1140 = vmatpush2.bf16.msra.mxu0 0
        %1141 = vmatprep.subr.bf16.mxu0 0
        %1142 = vmatpush2.bf16.msra.mxu0 0
        %1143 = vmatprep.mubr.bf16.mxu0 0
        %1144 = vmatmul.mubr.bf16.gmra.mxu0 %v1106
        %v1145 = vpop.f32.mrf.mxu0
        %v1146 = vadd.f32 %v1109, %v1145
        %v1147 = vpop.f32.mrf.mxu0
        %v1148 = vpop.f32.mrf.mxu0
        %v1149 = vadd.f32 %v1110, %v1148
        %v1150 = vpop.f32.mrf.mxu0
        %1151 = vdwg.mxu0
        %v1152 = vsel %vm1096, %v1146, -1e+30
        %v1153 = vsel %vm1097, %v1149, -1e+30
        %v1154 = vld [vmem:[#allocation2] sm:$0xf]
        %v1155 = vld [vmem:[#allocation2 + $0x8] sm:$0xf]
        %v1156 = vld [vmem:[#allocation2 + $0x10] sm:$0x1]
        %v1157 = vunpack.c.l.bf16 %v1154
        %v1158 = vunpack.c.l.bf16 %v1155
        %v1159 = vunpack.c.l.bf16 %v1156
        %vm1163 = vcmask 1046528
        %v1164 = vrot.slane %v1157, 1
        %v1165 = vrot.slane %v1158, 1
        %v1166 = vsel %vm1163, %v1164, %v1165
        %v1167 = vrot.slane %v1159, 1
        %v1168 = vsel %vm1163, %v1165, %v1167
        %v1171 = vmul.f32 %v689, %v1166
        %v1172 = vmul.f32 %v692, %v1168
        %v1173 = vpack.c.bf16 %v1172, %v1171
        %s1174 = sld [smem:[#allocation3 + $0x2]]
        %v1175 = vstv %s1174
        %v1176 = vmul.f32 %v1175, %v795
        %v1177 = vmul.f32 %v1175, %v798
        %1178 = vmatprep.subr.bf16.mxu0 0
        %1179 = vmatpush1.bf16.msra.mxu0 %v751
        %1180 = vmatprep.subr.bf16.mxu0 0
        %1181 = vmatpush1.bf16.msra.mxu0 %v750
        %1182 = vmatprep.subr.bf16.mxu0 0
        %1183 = vmatpush1.bf16.msra.mxu0 %v749
        %1184 = vmatprep.subr.bf16.mxu0 0
        %1185 = vmatpush1.bf16.msra.mxu0 %v748
        %1186 = vmatprep.subr.bf16.mxu0 0
        %1187 = vmatpush1.bf16.msra.mxu0 %v747
        %1188 = vmatprep.subr.bf16.mxu0 0
        %1189 = vmatpush1.bf16.msra.mxu0 %v746
        %1190 = vmatprep.subr.bf16.mxu0 0
        %1191 = vmatpush1.bf16.msra.mxu0 %v745
        %1192 = vmatprep.subr.bf16.mxu0 0
        %1193 = vmatpush1.bf16.msra.mxu0 %v744
        %1194 = vmatprep.subr.bf16.mxu0 0
        %1195 = vmatpush2.bf16.msra.mxu0 0
        %1196 = vmatprep.subr.bf16.mxu0 0
        %1197 = vmatpush2.bf16.msra.mxu0 0
        %1198 = vmatprep.subr.bf16.mxu0 0
        %1199 = vmatpush2.bf16.msra.mxu0 0
        %1200 = vmatprep.subr.bf16.mxu0 0
        %1201 = vmatpush2.bf16.msra.mxu0 0
        %1202 = vmatprep.subr.bf16.mxu0 0
        %1203 = vmatpush2.bf16.msra.mxu0 0
        %1204 = vmatprep.subr.bf16.mxu0 0
        %1205 = vmatpush2.bf16.msra.mxu0 0
        %1206 = vmatprep.subr.bf16.mxu0 0
        %1207 = vmatpush2.bf16.msra.mxu0 0
        %1208 = vmatprep.subr.bf16.mxu0 0
        %1209 = vmatpush2.bf16.msra.mxu0 0
        %1210 = vmatprep.mubr.bf16.mxu0 0
        %1211 = vmatmul.mubr.bf16.gmra.mxu0 %v1173
        %v1212 = vpop.f32.mrf.mxu0
        %v1213 = vadd.f32 %v1176, %v1212
        %v1214 = vpop.f32.mrf.mxu0
        %v1215 = vpop.f32.mrf.mxu0
        %v1216 = vadd.f32 %v1177, %v1215
        %v1217 = vpop.f32.mrf.mxu0
        %1218 = vdwg.mxu0
        %v1219 = vmax.f32 %v1098, %v1152
        %v1220 = vmax.f32 %v1099, %v1153
        %v1221 = vmax.f32 %v1219, %v1213
        %v1222 = vmax.f32 %v1220, %v1216
        %v1223 = vsub.f32 %v1098, %v1221
        %v1224 = vsub.f32 %v1099, %v1222
        %v1225 = vmul.f32 %v1223, 1.442695
        %v1226 = vpow.pop %v1225
        %v1227 = vmul.f32 %v1224, 1.442695
        %v1228 = vpow.pop %v1227
        %v1229 = vsub.f32 %v1152, %v1221
        %v1230 = vsub.f32 %v1153, %v1222
        %v1231 = vmul.f32 %v1229, 1.442695
        %v1232 = vpow.pop %v1231
        %v1233 = vmul.f32 %v1230, 1.442695
        %v1234 = vpow.pop %v1233
        %v1235 = vsub.f32 %v1213, %v1221
        %v1236 = vsub.f32 %v1216, %v1222
        %v1237 = vmul.f32 %v1235, 1.442695
        %v1238 = vpow.pop %v1237
        %v1239 = vmul.f32 %v1236, 1.442695
        %v1240 = vpow.pop %v1239
        %v1241 = vadd.f32 %v1226, %v1232
        %v1242 = vadd.f32 %v1228, %v1234
        %v1243 = vadd.f32 %v1241, %v1238
        %v1244 = vadd.f32 %v1242, %v1240
        %v1245 = vrcp.pop %v1243
        %v1246 = vmul.f32 1.0, %v1245
        %v1247 = vrcp.pop %v1244
        %v1248 = vmul.f32 1.0, %v1247
        %v1249 = vld [vmem:[%s6] sm:$0xf]
        %v1250 = vld [vmem:[%s6 + $0x4] sm:$0xf]
        %v1251 = vld [vmem:[%s6 + $0x8] sm:$0xf]
        %v1252 = vld [vmem:[%s6 + $0xc] sm:$0xf]
        %v1253 = vld [vmem:[%s6 + $0x10] sm:$0xf]
        %v1254 = vld [vmem:[%s6 + $0x14] sm:$0xf]
        %v1255 = vld [vmem:[%s6 + $0x18] sm:$0xf]
        %v1256 = vld [vmem:[%s6 + $0x1c] sm:$0xf]
        %v1257 = vld [vmem:[%s6 + $0x20] sm:$0xf]
        %v1258 = vld [vmem:[%s6 + $0x24] sm:$0xf]
        %v1259 = vld [vmem:[%s6 + $0x28] sm:$0xf]
        %v1260 = vld [vmem:[%s6 + $0x2c] sm:$0xf]
        %v1261 = vld [vmem:[%s6 + $0x30] sm:$0xf]
        %v1262 = vld [vmem:[%s6 + $0x34] sm:$0xf]
        %v1263 = vld [vmem:[%s6 + $0x38] sm:$0xf]
        %v1264 = vld [vmem:[%s6 + $0x3c] sm:$0xf]
        %v1265 = vmul.f32 %v1226, %v1246
        %v1266 = vmul.f32 %v1228, %v1248
        %v1267 = vpack.c.bf16 %v1266, %v1265
        %v1284 = vunpack.c.l.b16 %v1249
        %v1285 = vunpack.c.l.b16 %v1250
        %v1286 = vunpack.c.l.b16 %v1251
        %v1287 = vunpack.c.l.b16 %v1252
        %v1288 = vunpack.c.l.b16 %v1253
        %v1289 = vunpack.c.l.b16 %v1254
        %v1290 = vunpack.c.l.b16 %v1255
        %v1291 = vunpack.c.l.b16 %v1256
        %v1292 = vunpack.c.l.b16 %v1257
        %v1293 = vunpack.c.l.b16 %v1258
        %v1294 = vunpack.c.l.b16 %v1259
        %v1295 = vunpack.c.l.b16 %v1260
        %v1296 = vunpack.c.l.b16 %v1261
        %v1297 = vunpack.c.l.b16 %v1262
        %v1298 = vunpack.c.l.b16 %v1263
        %v1299 = vunpack.c.l.b16 %v1264
        %v1300 = vpack.c.b16 %v1285, %v1284
        %v1301 = vpack.c.b16 %v1287, %v1286
        %v1302 = vpack.c.b16 %v1289, %v1288
        %v1303 = vpack.c.b16 %v1291, %v1290
        %v1304 = vpack.c.b16 %v1293, %v1292
        %v1305 = vpack.c.b16 %v1295, %v1294
        %v1306 = vpack.c.b16 %v1297, %v1296
        %v1307 = vpack.c.b16 %v1299, %v1298
        %1316 = vmatprep.subr.bf16.mxu0 0
        %1317 = vmatpush1.bf16.msra.mxu0 %v1307
        %1318 = vmatprep.subr.bf16.mxu0 0
        %1319 = vmatpush1.bf16.msra.mxu0 %v1306
        %1320 = vmatprep.subr.bf16.mxu0 0
        %1321 = vmatpush1.bf16.msra.mxu0 %v1305
        %1322 = vmatprep.subr.bf16.mxu0 0
        %1323 = vmatpush1.bf16.msra.mxu0 %v1304
        %1324 = vmatprep.subr.bf16.mxu0 0
        %1325 = vmatpush1.bf16.msra.mxu0 %v1303
        %1326 = vmatprep.subr.bf16.mxu0 0
        %1327 = vmatpush1.bf16.msra.mxu0 %v1302
        %1328 = vmatprep.subr.bf16.mxu0 0
        %1329 = vmatpush1.bf16.msra.mxu0 %v1301
        %1330 = vmatprep.subr.bf16.mxu0 0
        %1331 = vmatpush1.bf16.msra.mxu0 %v1300
        %1332 = vmatprep.subr.bf16.mxu0 0
        %1333 = vmatpush2.bf16.msra.mxu0 0
        %1334 = vmatprep.subr.bf16.mxu0 0
        %1335 = vmatpush2.bf16.msra.mxu0 0
        %1336 = vmatprep.subr.bf16.mxu0 0
        %1337 = vmatpush2.bf16.msra.mxu0 0
        %1338 = vmatprep.subr.bf16.mxu0 0
        %1339 = vmatpush2.bf16.msra.mxu0 0
        %1340 = vmatprep.subr.bf16.mxu0 0
        %1341 = vmatpush2.bf16.msra.mxu0 0
        %1342 = vmatprep.subr.bf16.mxu0 0
        %1343 = vmatpush2.bf16.msra.mxu0 0
        %1344 = vmatprep.subr.bf16.mxu0 0
        %1345 = vmatpush2.bf16.msra.mxu0 0
        %1346 = vmatprep.subr.bf16.mxu0 0
        %1347 = vmatpush2.bf16.msra.mxu0 0
        %1348 = vmatprep.mubr.bf16.mxu0 0
        %1349 = vmatmul.mubr.bf16.gmra.mxu0 %v1267
        %v1350 = vpop.f32.mrf.mxu0
        %v1351 = vadd.f32 0.0, %v1350
        %v1352 = vpop.f32.mrf.mxu0
        %v1353 = vpop.f32.mrf.mxu0
        %v1354 = vadd.f32 0.0, %v1353
        %v1355 = vpop.f32.mrf.mxu0
        %1356 = vdwg.mxu0
        %v1357 = vld [vmem:[#allocation2 + $0x4] sm:$0xf]
        %v1358 = vld [vmem:[#allocation2 + $0xc] sm:$0xf]
        %v1359 = vunpack.c.l.bf16 %v1357
        %v1360 = vunpack.c.l.bf16 %v1358
        %v1361 = vmul.f32 %v1351, %v1359
        %v1362 = vmul.f32 %v1354, %v1360
        %v1363 = vmul.f32 %v1048, %v1265
        %v1364 = vmul.f32 %v1048, %v1266
        %v1365 = vmul.f32 %v1232, %v1246
        %v1366 = vmul.f32 %v1234, %v1248
        %v1367 = vpack.c.bf16 %v1366, %v1365
        %1368 = vmatprep.subr.bf16.mxu0 0
        %1369 = vmatpush1.bf16.msra.mxu0 %v1307
        %1370 = vmatprep.subr.bf16.mxu0 0
        %1371 = vmatpush1.bf16.msra.mxu0 %v1306
        %1372 = vmatprep.subr.bf16.mxu0 0
        %1373 = vmatpush1.bf16.msra.mxu0 %v1305
        %1374 = vmatprep.subr.bf16.mxu0 0
        %1375 = vmatpush1.bf16.msra.mxu0 %v1304
        %1376 = vmatprep.subr.bf16.mxu0 0
        %1377 = vmatpush1.bf16.msra.mxu0 %v1303
        %1378 = vmatprep.subr.bf16.mxu0 0
        %1379 = vmatpush1.bf16.msra.mxu0 %v1302
        %1380 = vmatprep.subr.bf16.mxu0 0
        %1381 = vmatpush1.bf16.msra.mxu0 %v1301
        %1382 = vmatprep.subr.bf16.mxu0 0
        %1383 = vmatpush1.bf16.msra.mxu0 %v1300
        %1384 = vmatprep.subr.bf16.mxu0 0
        %1385 = vmatpush2.bf16.msra.mxu0 0
        %1386 = vmatprep.subr.bf16.mxu0 0
        %1387 = vmatpush2.bf16.msra.mxu0 0
        %1388 = vmatprep.subr.bf16.mxu0 0
        %1389 = vmatpush2.bf16.msra.mxu0 0
        %1390 = vmatprep.subr.bf16.mxu0 0
        %1391 = vmatpush2.bf16.msra.mxu0 0
        %1392 = vmatprep.subr.bf16.mxu0 0
        %1393 = vmatpush2.bf16.msra.mxu0 0
        %1394 = vmatprep.subr.bf16.mxu0 0
        %1395 = vmatpush2.bf16.msra.mxu0 0
        %1396 = vmatprep.subr.bf16.mxu0 0
        %1397 = vmatpush2.bf16.msra.mxu0 0
        %1398 = vmatprep.subr.bf16.mxu0 0
        %1399 = vmatpush2.bf16.msra.mxu0 0
        %1400 = vmatprep.mubr.bf16.mxu0 0
        %1401 = vmatmul.mubr.bf16.gmra.mxu0 %v1367
        %v1402 = vpop.f32.mrf.mxu0
        %v1403 = vadd.f32 0.0, %v1402
        %v1404 = vpop.f32.mrf.mxu0
        %v1405 = vpop.f32.mrf.mxu0
        %v1406 = vadd.f32 0.0, %v1405
        %v1407 = vpop.f32.mrf.mxu0
        %1408 = vdwg.mxu0
        %v1409 = vld [vmem:[%s1029 + $0x4] sm:$0xf]
        %v1410 = vld [vmem:[%s1029 + $0xc] sm:$0xf]
        %v1411 = vunpack.c.l.bf16 %v1409
        %v1412 = vunpack.c.l.bf16 %v1410
        %v1413 = vmul.f32 %v1403, %v1411
        %v1414 = vmul.f32 %v1406, %v1412
        %v1415 = vadd.f32 %v1361, %v1413
        %v1416 = vadd.f32 %v1362, %v1414
        %v1417 = vmul.f32 %v1108, %v1365
        %v1418 = vmul.f32 %v1108, %v1366
        %v1419 = vadd.f32 %v1363, %v1417
        %v1420 = vadd.f32 %v1364, %v1418
        %v1421 = vmul.f32 %v1238, %v1246
        %v1422 = vmul.f32 %v1240, %v1248
        %v1423 = vpack.c.bf16 %v1422, %v1421
        %1424 = vmatprep.subr.bf16.mxu0 0
        %1425 = vmatpush1.bf16.msra.mxu0 %v1307
        %1426 = vmatprep.subr.bf16.mxu0 0
        %1427 = vmatpush1.bf16.msra.mxu0 %v1306
        %1428 = vmatprep.subr.bf16.mxu0 0
        %1429 = vmatpush1.bf16.msra.mxu0 %v1305
        %1430 = vmatprep.subr.bf16.mxu0 0
        %1431 = vmatpush1.bf16.msra.mxu0 %v1304
        %1432 = vmatprep.subr.bf16.mxu0 0
        %1433 = vmatpush1.bf16.msra.mxu0 %v1303
        %1434 = vmatprep.subr.bf16.mxu0 0
        %1435 = vmatpush1.bf16.msra.mxu0 %v1302
        %1436 = vmatprep.subr.bf16.mxu0 0
        %1437 = vmatpush1.bf16.msra.mxu0 %v1301
        %1438 = vmatprep.subr.bf16.mxu0 0
        %1439 = vmatpush1.bf16.msra.mxu0 %v1300
        %1440 = vmatprep.subr.bf16.mxu0 0
        %1441 = vmatpush2.bf16.msra.mxu0 0
        %1442 = vmatprep.subr.bf16.mxu0 0
        %1443 = vmatpush2.bf16.msra.mxu0 0
        %1444 = vmatprep.subr.bf16.mxu0 0
        %1445 = vmatpush2.bf16.msra.mxu0 0
        %1446 = vmatprep.subr.bf16.mxu0 0
        %1447 = vmatpush2.bf16.msra.mxu0 0
        %1448 = vmatprep.subr.bf16.mxu0 0
        %1449 = vmatpush2.bf16.msra.mxu0 0
        %1450 = vmatprep.subr.bf16.mxu0 0
        %1451 = vmatpush2.bf16.msra.mxu0 0
        %1452 = vmatprep.subr.bf16.mxu0 0
        %1453 = vmatpush2.bf16.msra.mxu0 0
        %1454 = vmatprep.subr.bf16.mxu0 0
        %1455 = vmatpush2.bf16.msra.mxu0 0
        %1456 = vmatprep.mubr.bf16.mxu0 0
        %1457 = vmatmul.mubr.bf16.gmra.mxu0 %v1423
        %v1458 = vpop.f32.mrf.mxu0
        %v1459 = vadd.f32 0.0, %v1458
        %v1460 = vpop.f32.mrf.mxu0
        %v1461 = vpop.f32.mrf.mxu0
        %v1462 = vadd.f32 0.0, %v1461
        %v1463 = vpop.f32.mrf.mxu0
        %1464 = vdwg.mxu0
        %v1465 = vld [vmem:[#allocation2 + $0x4] sm:$0xf]
        %v1466 = vld [vmem:[#allocation2 + $0xc] sm:$0xf]
        %v1467 = vld [vmem:[#allocation2 + $0x14] sm:$0x1]
        %v1468 = vunpack.c.l.bf16 %v1465
        %v1469 = vunpack.c.l.bf16 %v1466
        %v1470 = vunpack.c.l.bf16 %v1467
        %v1474 = vrot.slane %v1468, 1
        %v1475 = vrot.slane %v1469, 1
        %v1476 = vsel %vm1163, %v1474, %v1475
        %v1477 = vrot.slane %v1470, 1
        %v1478 = vsel %vm1163, %v1475, %v1477
        %v1481 = vmul.f32 %v1459, %v1476
        %v1482 = vmul.f32 %v1462, %v1478
        %v1483 = vadd.f32 %v1415, %v1481
        %v1484 = vadd.f32 %v1416, %v1482
        %v1485 = vmul.f32 %v1175, %v1421
        %v1486 = vmul.f32 %v1175, %v1422
        %v1487 = vadd.f32 %v1419, %v1485
        %v1488 = vadd.f32 %v1420, %v1486
        %v1489 = vpack.c.bf16 %v1488, %v1487
        %1490 = vmatprep.subr.bf16.mxu0 0
        %1491 = vmatpush1.bf16.msra.mxu0 %v1307
        %1492 = vmatprep.subr.bf16.mxu0 0
        %1493 = vmatpush1.bf16.msra.mxu0 %v1306
        %1494 = vmatprep.subr.bf16.mxu0 0
        %1495 = vmatpush1.bf16.msra.mxu0 %v1305
        %1496 = vmatprep.subr.bf16.mxu0 0
        %1497 = vmatpush1.bf16.msra.mxu0 %v1304
        %1498 = vmatprep.subr.bf16.mxu0 0
        %1499 = vmatpush1.bf16.msra.mxu0 %v1303
        %1500 = vmatprep.subr.bf16.mxu0 0
        %1501 = vmatpush1.bf16.msra.mxu0 %v1302
        %1502 = vmatprep.subr.bf16.mxu0 0
        %1503 = vmatpush1.bf16.msra.mxu0 %v1301
        %1504 = vmatprep.subr.bf16.mxu0 0
        %1505 = vmatpush1.bf16.msra.mxu0 %v1300
        %1506 = vmatprep.subr.bf16.mxu0 0
        %1507 = vmatpush2.bf16.msra.mxu0 0
        %1508 = vmatprep.subr.bf16.mxu0 0
        %1509 = vmatpush2.bf16.msra.mxu0 0
        %1510 = vmatprep.subr.bf16.mxu0 0
        %1511 = vmatpush2.bf16.msra.mxu0 0
        %1512 = vmatprep.subr.bf16.mxu0 0
        %1513 = vmatpush2.bf16.msra.mxu0 0
        %1514 = vmatprep.subr.bf16.mxu0 0
        %1515 = vmatpush2.bf16.msra.mxu0 0
        %1516 = vmatprep.subr.bf16.mxu0 0
        %1517 = vmatpush2.bf16.msra.mxu0 0
        %1518 = vmatprep.subr.bf16.mxu0 0
        %1519 = vmatpush2.bf16.msra.mxu0 0
        %1520 = vmatprep.subr.bf16.mxu0 0
        %1521 = vmatpush2.bf16.msra.mxu0 0
        %1522 = vmatprep.mubr.bf16.mxu0 0
        %1523 = vmatmul.mubr.bf16.gmra.mxu0 %v1489
        %v1524 = vpop.f32.mrf.mxu0
        %v1525 = vadd.f32 0.0, %v1524
        %v1526 = vpop.f32.mrf.mxu0
        %v1527 = vpop.f32.mrf.mxu0
        %v1528 = vadd.f32 0.0, %v1527
        %v1529 = vpop.f32.mrf.mxu0
        %1530 = vdwg.mxu0
        %v1531 = vadd.f32 %v1483, %v1525
        %v1532 = vadd.f32 %v1484, %v1528
        %v1533 = vpack.c.bf16 %v1532, %v1531
        %v1534 = vld [vmem:[%s7] sm:$0xf]
        %v1535 = vld [vmem:[%s7 + $0x4] sm:$0xf]
        %v1536 = vld [vmem:[%s7 + $0x8] sm:$0xf]
        %v1537 = vld [vmem:[%s7 + $0xc] sm:$0xf]
        %v1538 = vld [vmem:[%s7 + $0x10] sm:$0xf]
        %v1539 = vld [vmem:[%s7 + $0x14] sm:$0xf]
        %v1540 = vld [vmem:[%s7 + $0x18] sm:$0xf]
        %v1541 = vld [vmem:[%s7 + $0x1c] sm:$0xf]
        %v1542 = vld [vmem:[%s7 + $0x20] sm:$0xf]
        %v1543 = vld [vmem:[%s7 + $0x24] sm:$0xf]
        %v1544 = vld [vmem:[%s7 + $0x28] sm:$0xf]
        %v1545 = vld [vmem:[%s7 + $0x2c] sm:$0xf]
        %v1546 = vld [vmem:[%s7 + $0x30] sm:$0xf]
        %v1547 = vld [vmem:[%s7 + $0x34] sm:$0xf]
        %v1548 = vld [vmem:[%s7 + $0x38] sm:$0xf]
        %v1549 = vld [vmem:[%s7 + $0x3c] sm:$0xf]
        %v1566 = vunpack.c.l.b16 %v1534
        %v1567 = vunpack.c.l.b16 %v1535
        %v1568 = vunpack.c.l.b16 %v1536
        %v1569 = vunpack.c.l.b16 %v1537
        %v1570 = vunpack.c.l.b16 %v1538
        %v1571 = vunpack.c.l.b16 %v1539
        %v1572 = vunpack.c.l.b16 %v1540
        %v1573 = vunpack.c.l.b16 %v1541
        %v1574 = vunpack.c.l.b16 %v1542
        %v1575 = vunpack.c.l.b16 %v1543
        %v1576 = vunpack.c.l.b16 %v1544
        %v1577 = vunpack.c.l.b16 %v1545
        %v1578 = vunpack.c.l.b16 %v1546
        %v1579 = vunpack.c.l.b16 %v1547
        %v1580 = vunpack.c.l.b16 %v1548
        %v1581 = vunpack.c.l.b16 %v1549
        %v1582 = vpack.c.b16 %v1567, %v1566
        %v1583 = vpack.c.b16 %v1569, %v1568
        %v1584 = vpack.c.b16 %v1571, %v1570
        %v1585 = vpack.c.b16 %v1573, %v1572
        %v1586 = vpack.c.b16 %v1575, %v1574
        %v1587 = vpack.c.b16 %v1577, %v1576
        %v1588 = vpack.c.b16 %v1579, %v1578
        %v1589 = vpack.c.b16 %v1581, %v1580
        %1598 = vmatprep.subr.bf16.mxu0 0
        %1599 = vmatpush1.bf16.msra.mxu0 %v1589
        %1600 = vmatprep.subr.bf16.mxu0 0
        %1601 = vmatpush1.bf16.msra.mxu0 %v1588
        %1602 = vmatprep.subr.bf16.mxu0 0
        %1603 = vmatpush1.bf16.msra.mxu0 %v1587
        %1604 = vmatprep.subr.bf16.mxu0 0
        %1605 = vmatpush1.bf16.msra.mxu0 %v1586
        %1606 = vmatprep.subr.bf16.mxu0 0
        %1607 = vmatpush1.bf16.msra.mxu0 %v1585
        %1608 = vmatprep.subr.bf16.mxu0 0
        %1609 = vmatpush1.bf16.msra.mxu0 %v1584
        %1610 = vmatprep.subr.bf16.mxu0 0
        %1611 = vmatpush1.bf16.msra.mxu0 %v1583
        %1612 = vmatprep.subr.bf16.mxu0 0
        %1613 = vmatpush1.bf16.msra.mxu0 %v1582
        %1614 = vmatprep.subr.bf16.mxu0 0
        %1615 = vmatpush2.bf16.msra.mxu0 0
        %1616 = vmatprep.subr.bf16.mxu0 0
        %1617 = vmatpush2.bf16.msra.mxu0 0
        %1618 = vmatprep.subr.bf16.mxu0 0
        %1619 = vmatpush2.bf16.msra.mxu0 0
        %1620 = vmatprep.subr.bf16.mxu0 0
        %1621 = vmatpush2.bf16.msra.mxu0 0
        %1622 = vmatprep.subr.bf16.mxu0 0
        %1623 = vmatpush2.bf16.msra.mxu0 0
        %1624 = vmatprep.subr.bf16.mxu0 0
        %1625 = vmatpush2.bf16.msra.mxu0 0
        %1626 = vmatprep.subr.bf16.mxu0 0
        %1627 = vmatpush2.bf16.msra.mxu0 0
        %1628 = vmatprep.subr.bf16.mxu0 0
        %1629 = vmatpush2.bf16.msra.mxu0 0
        %1630 = vmatprep.mubr.bf16.mxu0 0
        %1631 = vmatmul.mubr.bf16.gmra.mxu0 %v1533
        %v1632 = vpop.f32.mrf.mxu0
        %v1633 = vadd.f32 %v546, %v1632
        %v1634 = vpop.f32.mrf.mxu0
        %v1635 = vpop.f32.mrf.mxu0
        %v1636 = vadd.f32 %v547, %v1635
        %v1637 = vpop.f32.mrf.mxu0
        %1638 = vdwg.mxu0
        %1639 = vadd.xlane.f32.xlu0 %v1633
        %v1640 = vpop.xlane.xlu0 %1639
        %1641 = vadd.xlane.f32.xlu0 %v1636
        %v1642 = vpop.xlane.xlu0 %1641
        %v1643 = vmul.f32 %v1640, %v554
        %v1644 = vmul.f32 %v1642, %v554
        %v1645 = vsub.f32 %v1633, %v1643
        %v1646 = vsub.f32 %v1636, %v1644
        %v1647 = vmul.f32 %v1645, %v1645
        %v1648 = vmul.f32 %v1646, %v1646
        %1649 = vadd.xlane.f32.xlu0 %v1647
        %v1650 = vpop.xlane.xlu0 %1649
        %1651 = vadd.xlane.f32.xlu0 %v1648
        %v1652 = vpop.xlane.xlu0 %1651
        %v1653 = vmul.f32 %v1650, %v554
        %v1654 = vmul.f32 %v1652, %v554
        %v1655 = vadd.f32 %v1653, 1e-05
        %v1656 = vadd.f32 %v1654, 1e-05
        %v1657 = vrsqrt.pop %v1655
        %v1658 = vrsqrt.pop %v1656
        %v1659 = vmul.f32 %v1645, %v1657
        %v1660 = vmul.f32 %v1646, %v1658
        %v1661 = vmul.f32 %v1659, %v577
        %v1662 = vmul.f32 %v1660, %v577
        %v1663 = vadd.f32 %v1661, %v585
        %v1664 = vadd.f32 %v1662, %v585
        %v1665 = vpack.c.bf16 %v1664, %v1663
        %v1666 = vld [vmem:[%s8] sm:$0xff]
        %v1667 = vld [vmem:[%s8 + $0x8] sm:$0xff]
        %v1668 = vld [vmem:[%s8 + $0x10] sm:$0xff]
        %v1669 = vld [vmem:[%s8 + $0x18] sm:$0xff]
        %v1670 = vld [vmem:[%s8 + $0x20] sm:$0xff]
        %v1671 = vld [vmem:[%s8 + $0x28] sm:$0xff]
        %v1672 = vld [vmem:[%s8 + $0x30] sm:$0xff]
        %v1673 = vld [vmem:[%s8 + $0x38] sm:$0xff]
        %v1674 = vld [vmem:[%s8 + $0x40] sm:$0xff]
        %v1675 = vld [vmem:[%s8 + $0x48] sm:$0xff]
        %v1676 = vld [vmem:[%s8 + $0x50] sm:$0xff]
        %v1677 = vld [vmem:[%s8 + $0x58] sm:$0xff]
        %v1678 = vld [vmem:[%s8 + $0x60] sm:$0xff]
        %v1679 = vld [vmem:[%s8 + $0x68] sm:$0xff]
        %v1680 = vld [vmem:[%s8 + $0x70] sm:$0xff]
        %v1681 = vld [vmem:[%s8 + $0x78] sm:$0xff]
        %v1682 = vld [vmem:[%s12] sm:$0x3]
        %v1684 = vlaneseq
        %v1685 = vshrl.u32 %v1684, 7
        %v1686 = vsub.s32 0, %v1685
        %v1687 = vrot.slane %v1682, %v1686
        %v1688 = vlaneseq
        %v1689 = vshrl.u32 %v1688, 7
        %v1690 = vsub.s32 1, %v1689
        %v1691 = vrot.slane %v1682, %v1690
        %v1710 = vunpack.c.l.b16 %v1666
        %v1711 = vunpack.c.h.b16 %v1666
        %v1712 = vunpack.c.l.b16 %v1667
        %v1713 = vunpack.c.h.b16 %v1667
        %v1714 = vunpack.c.l.b16 %v1668
        %v1715 = vunpack.c.h.b16 %v1668
        %v1716 = vunpack.c.l.b16 %v1669
        %v1717 = vunpack.c.h.b16 %v1669
        %v1718 = vunpack.c.l.b16 %v1670
        %v1719 = vunpack.c.h.b16 %v1670
        %v1720 = vunpack.c.l.b16 %v1671
        %v1721 = vunpack.c.h.b16 %v1671
        %v1722 = vunpack.c.l.b16 %v1672
        %v1723 = vunpack.c.h.b16 %v1672
        %v1724 = vunpack.c.l.b16 %v1673
        %v1725 = vunpack.c.h.b16 %v1673
        %v1726 = vunpack.c.l.b16 %v1674
        %v1727 = vunpack.c.h.b16 %v1674
        %v1728 = vunpack.c.l.b16 %v1675
        %v1729 = vunpack.c.h.b16 %v1675
        %v1730 = vunpack.c.l.b16 %v1676
        %v1731 = vunpack.c.h.b16 %v1676
        %v1732 = vunpack.c.l.b16 %v1677
        %v1733 = vunpack.c.h.b16 %v1677
        %v1734 = vunpack.c.l.b16 %v1678
        %v1735 = vunpack.c.h.b16 %v1678
        %v1736 = vunpack.c.l.b16 %v1679
        %v1737 = vunpack.c.h.b16 %v1679
        %v1738 = vunpack.c.l.b16 %v1680
        %v1739 = vunpack.c.h.b16 %v1680
        %v1740 = vunpack.c.l.b16 %v1681
        %v1741 = vunpack.c.h.b16 %v1681
        %v1742 = vpack.c.b16 %v1712, %v1710
        %v1743 = vpack.c.b16 %v1713, %v1711
        %v1744 = vpack.c.b16 %v1716, %v1714
        %v1745 = vpack.c.b16 %v1717, %v1715
        %v1746 = vpack.c.b16 %v1720, %v1718
        %v1747 = vpack.c.b16 %v1721, %v1719
        %v1748 = vpack.c.b16 %v1724, %v1722
        %v1749 = vpack.c.b16 %v1725, %v1723
        %v1750 = vpack.c.b16 %v1728, %v1726
        %v1751 = vpack.c.b16 %v1729, %v1727
        %v1752 = vpack.c.b16 %v1732, %v1730
        %v1753 = vpack.c.b16 %v1733, %v1731
        %v1754 = vpack.c.b16 %v1736, %v1734
        %v1755 = vpack.c.b16 %v1737, %v1735
        %v1756 = vpack.c.b16 %v1740, %v1738
        %v1757 = vpack.c.b16 %v1741, %v1739
        %1774 = vmatprep.subr.bf16.mxu0 %v1757
        %1775 = vmatpush1.bf16.msra.mxu0 %v1756
        %1776 = vmatprep.subr.bf16.mxu0 %v1755
        %1777 = vmatpush1.bf16.msra.mxu0 %v1754
        %1778 = vmatprep.subr.bf16.mxu0 %v1753
        %1779 = vmatpush1.bf16.msra.mxu0 %v1752
        %1780 = vmatprep.subr.bf16.mxu0 %v1751
        %1781 = vmatpush1.bf16.msra.mxu0 %v1750
        %1782 = vmatprep.subr.bf16.mxu0 %v1749
        %1783 = vmatpush1.bf16.msra.mxu0 %v1748
        %1784 = vmatprep.subr.bf16.mxu0 %v1747
        %1785 = vmatpush1.bf16.msra.mxu0 %v1746
        %1786 = vmatprep.subr.bf16.mxu0 %v1745
        %1787 = vmatpush1.bf16.msra.mxu0 %v1744
        %1788 = vmatprep.subr.bf16.mxu0 %v1743
        %1789 = vmatpush1.bf16.msra.mxu0 %v1742
        %1790 = vmatprep.subr.bf16.mxu0 0
        %1791 = vmatpush2.bf16.msra.mxu0 0
        %1792 = vmatprep.subr.bf16.mxu0 0
        %1793 = vmatpush2.bf16.msra.mxu0 0
        %1794 = vmatprep.subr.bf16.mxu0 0
        %1795 = vmatpush2.bf16.msra.mxu0 0
        %1796 = vmatprep.subr.bf16.mxu0 0
        %1797 = vmatpush2.bf16.msra.mxu0 0
        %1798 = vmatprep.subr.bf16.mxu0 0
        %1799 = vmatpush2.bf16.msra.mxu0 0
        %1800 = vmatprep.subr.bf16.mxu0 0
        %1801 = vmatpush2.bf16.msra.mxu0 0
        %1802 = vmatprep.subr.bf16.mxu0 0
        %1803 = vmatpush2.bf16.msra.mxu0 0
        %1804 = vmatprep.subr.bf16.mxu0 0
        %1805 = vmatpush2.bf16.msra.mxu0 0
        %1806 = vmatprep.mubr.bf16.mxu0 0
        %1807 = vmatmul.mubr.bf16.gmra.mxu0 %v1665
        %v1808 = vpop.f32.mrf.mxu0
        %v1809 = vadd.f32 %v1687, %v1808
        %v1810 = vpop.f32.mrf.mxu0
        %v1811 = vadd.f32 %v1691, %v1810
        %v1812 = vpop.f32.mrf.mxu0
        %v1813 = vadd.f32 %v1687, %v1812
        %v1814 = vpop.f32.mrf.mxu0
        %v1815 = vadd.f32 %v1691, %v1814
        %1816 = vdwg.mxu0
        %v1817 = vmul.f32 %v1809, 0.5
        %v1818 = vmul.f32 %v1811, 0.5
        %v1819 = vmul.f32 %v1813, 0.5
        %v1820 = vmul.f32 %v1815, 0.5
        %v1821 = vmul.f32 %v1809, 0.044715
        %v1822 = vmul.f32 %v1811, 0.044715
        %v1823 = vmul.f32 %v1813, 0.044715
        %v1824 = vmul.f32 %v1815, 0.044715
        %v1825 = vmul.f32 %v1821, %v1809
        %v1826 = vmul.f32 %v1822, %v1811
        %v1827 = vmul.f32 %v1823, %v1813
        %v1828 = vmul.f32 %v1824, %v1815
        %v1829 = vmul.f32 %v1825, %v1809
        %v1830 = vmul.f32 %v1826, %v1811
        %v1831 = vmul.f32 %v1827, %v1813
        %v1832 = vmul.f32 %v1828, %v1815
        %v1833 = vadd.f32 %v1809, %v1829
        %v1834 = vadd.f32 %v1811, %v1830
        %v1835 = vadd.f32 %v1813, %v1831
        %v1836 = vadd.f32 %v1815, %v1832
        %v1837 = vmul.f32 %v1833, 0.7978846
        %v1838 = vmul.f32 %v1834, 0.7978846
        %v1839 = vmul.f32 %v1835, 0.7978846
        %v1840 = vmul.f32 %v1836, 0.7978846
        %v1841 = vtanh.pop %v1837
        %v1842 = vtanh.pop %v1838
        %v1843 = vtanh.pop %v1839
        %v1844 = vtanh.pop %v1840
        %v1845 = vadd.f32 %v1841, 1.0
        %v1846 = vadd.f32 %v1842, 1.0
        %v1847 = vadd.f32 %v1843, 1.0
        %v1848 = vadd.f32 %v1844, 1.0
        %v1849 = vmul.f32 %v1817, %v1845
        %v1850 = vmul.f32 %v1818, %v1846
        %v1851 = vmul.f32 %v1819, %v1847
        %v1852 = vmul.f32 %v1820, %v1848
        %v1853 = vpack.c.bf16 %v1851, %v1849
        %v1854 = vpack.c.bf16 %v1852, %v1850
        %v1855 = vld [vmem:[%s9] sm:$0xf]
        %v1856 = vld [vmem:[%s9 + $0x4] sm:$0xf]
        %v1857 = vld [vmem:[%s9 + $0x8] sm:$0xf]
        %v1858 = vld [vmem:[%s9 + $0xc] sm:$0xf]
        %v1859 = vld [vmem:[%s9 + $0x10] sm:$0xf]
        %v1860 = vld [vmem:[%s9 + $0x14] sm:$0xf]
        %v1861 = vld [vmem:[%s9 + $0x18] sm:$0xf]
        %v1862 = vld [vmem:[%s9 + $0x1c] sm:$0xf]
        %v1863 = vld [vmem:[%s9 + $0x20] sm:$0xf]
        %v1864 = vld [vmem:[%s9 + $0x24] sm:$0xf]
        %v1865 = vld [vmem:[%s9 + $0x28] sm:$0xf]
        %v1866 = vld [vmem:[%s9 + $0x2c] sm:$0xf]
        %v1867 = vld [vmem:[%s9 + $0x30] sm:$0xf]
        %v1868 = vld [vmem:[%s9 + $0x34] sm:$0xf]
        %v1869 = vld [vmem:[%s9 + $0x38] sm:$0xf]
        %v1870 = vld [vmem:[%s9 + $0x3c] sm:$0xf]
        %v1871 = vld [vmem:[%s9 + $0x40] sm:$0xf]
        %v1872 = vld [vmem:[%s9 + $0x44] sm:$0xf]
        %v1873 = vld [vmem:[%s9 + $0x48] sm:$0xf]
        %v1874 = vld [vmem:[%s9 + $0x4c] sm:$0xf]
        %v1875 = vld [vmem:[%s9 + $0x50] sm:$0xf]
        %v1876 = vld [vmem:[%s9 + $0x54] sm:$0xf]
        %v1877 = vld [vmem:[%s9 + $0x58] sm:$0xf]
        %v1878 = vld [vmem:[%s9 + $0x5c] sm:$0xf]
        %v1879 = vld [vmem:[%s9 + $0x60] sm:$0xf]
        %v1880 = vld [vmem:[%s9 + $0x64] sm:$0xf]
        %v1881 = vld [vmem:[%s9 + $0x68] sm:$0xf]
        %v1882 = vld [vmem:[%s9 + $0x6c] sm:$0xf]
        %v1883 = vld [vmem:[%s9 + $0x70] sm:$0xf]
        %v1884 = vld [vmem:[%s9 + $0x74] sm:$0xf]
        %v1885 = vld [vmem:[%s9 + $0x78] sm:$0xf]
        %v1886 = vld [vmem:[%s9 + $0x7c] sm:$0xf]
        %v1887 = vld [vmem:[%s13] sm:$0x1]
        %v1889 = vlaneseq
        %v1890 = vshrl.u32 %v1889, 7
        %v1891 = vsub.s32 0, %v1890
        %v1892 = vrot.slane %v1887, %v1891
        %v1926 = vunpack.c.l.b16 %v1855
        %v1927 = vunpack.c.l.b16 %v1856
        %v1928 = vunpack.c.l.b16 %v1857
        %v1929 = vunpack.c.l.b16 %v1858
        %v1930 = vunpack.c.l.b16 %v1859
        %v1931 = vunpack.c.l.b16 %v1860
        %v1932 = vunpack.c.l.b16 %v1861
        %v1933 = vunpack.c.l.b16 %v1862
        %v1934 = vunpack.c.l.b16 %v1863
        %v1935 = vunpack.c.l.b16 %v1864
        %v1936 = vunpack.c.l.b16 %v1865
        %v1937 = vunpack.c.l.b16 %v1866
        %v1938 = vunpack.c.l.b16 %v1867
        %v1939 = vunpack.c.l.b16 %v1868
        %v1940 = vunpack.c.l.b16 %v1869
        %v1941 = vunpack.c.l.b16 %v1870
        %v1942 = vunpack.c.l.b16 %v1871
        %v1943 = vunpack.c.l.b16 %v1872
        %v1944 = vunpack.c.l.b16 %v1873
        %v1945 = vunpack.c.l.b16 %v1874
        %v1946 = vunpack.c.l.b16 %v1875
        %v1947 = vunpack.c.l.b16 %v1876
        %v1948 = vunpack.c.l.b16 %v1877
        %v1949 = vunpack.c.l.b16 %v1878
        %v1950 = vunpack.c.l.b16 %v1879
        %v1951 = vunpack.c.l.b16 %v1880
        %v1952 = vunpack.c.l.b16 %v1881
        %v1953 = vunpack.c.l.b16 %v1882
        %v1954 = vunpack.c.l.b16 %v1883
        %v1955 = vunpack.c.l.b16 %v1884
        %v1956 = vunpack.c.l.b16 %v1885
        %v1957 = vunpack.c.l.b16 %v1886
        %v1958 = vpack.c.b16 %v1927, %v1926
        %v1959 = vpack.c.b16 %v1929, %v1928
        %v1960 = vpack.c.b16 %v1931, %v1930
        %v1961 = vpack.c.b16 %v1933, %v1932
        %v1962 = vpack.c.b16 %v1935, %v1934
        %v1963 = vpack.c.b16 %v1937, %v1936
        %v1964 = vpack.c.b16 %v1939, %v1938
        %v1965 = vpack.c.b16 %v1941, %v1940
        %v1966 = vpack.c.b16 %v1943, %v1942
        %v1967 = vpack.c.b16 %v1945, %v1944
        %v1968 = vpack.c.b16 %v1947, %v1946
        %v1969 = vpack.c.b16 %v1949, %v1948
        %v1970 = vpack.c.b16 %v1951, %v1950
        %v1971 = vpack.c.b16 %v1953, %v1952
        %v1972 = vpack.c.b16 %v1955, %v1954
        %v1973 = vpack.c.b16 %v1957, %v1956
        %1990 = vmatprep.subr.bf16.mxu0 0
        %1991 = vmatpush1.bf16.msra.mxu0 %v1965
        %1992 = vmatprep.subr.bf16.mxu0 0
        %1993 = vmatpush1.bf16.msra.mxu0 %v1964
        %1994 = vmatprep.subr.bf16.mxu0 0
        %1995 = vmatpush1.bf16.msra.mxu0 %v1963
        %1996 = vmatprep.subr.bf16.mxu0 0
        %1997 = vmatpush1.bf16.msra.mxu0 %v1962
        %1998 = vmatprep.subr.bf16.mxu0 0
        %1999 = vmatpush1.bf16.msra.mxu0 %v1961
        %2000 = vmatprep.subr.bf16.mxu0 0
        %2001 = vmatpush1.bf16.msra.mxu0 %v1960
        %2002 = vmatprep.subr.bf16.mxu0 0
        %2003 = vmatpush1.bf16.msra.mxu0 %v1959
        %2004 = vmatprep.subr.bf16.mxu0 0
        %2005 = vmatpush1.bf16.msra.mxu0 %v1958
        %2006 = vmatprep.subr.bf16.mxu0 0
        %2007 = vmatpush2.bf16.msra.mxu0 %v1973
        %2008 = vmatprep.subr.bf16.mxu0 0
        %2009 = vmatpush2.bf16.msra.mxu0 %v1972
        %2010 = vmatprep.subr.bf16.mxu0 0
        %2011 = vmatpush2.bf16.msra.mxu0 %v1971
        %2012 = vmatprep.subr.bf16.mxu0 0
        %2013 = vmatpush2.bf16.msra.mxu0 %v1970
        %2014 = vmatprep.subr.bf16.mxu0 0
        %2015 = vmatpush2.bf16.msra.mxu0 %v1969
        %2016 = vmatprep.subr.bf16.mxu0 0
        %2017 = vmatpush2.bf16.msra.mxu0 %v1968
        %2018 = vmatprep.subr.bf16.mxu0 0
        %2019 = vmatpush2.bf16.msra.mxu0 %v1967
        %2020 = vmatprep.subr.bf16.mxu0 0
        %2021 = vmatpush2.bf16.msra.mxu0 %v1966
        %2022 = vmatprep.mubr.bf16.mxu0 %v1854
        %2023 = vmatmul.mubr.bf16.gmra.mxu0 %v1853
        %v2024 = vpop.f32.mrf.mxu0
        %v2025 = vadd.f32 %v1892, %v2024
        %v2026 = vpop.f32.mrf.mxu0
        %v2027 = vpop.f32.mrf.mxu0
        %v2028 = vadd.f32 %v1892, %v2027
        %v2029 = vpop.f32.mrf.mxu0
        %2030 = vdwg.mxu0
        %v2031 = vadd.f32 %v2025, %v1633
        %v2032 = vadd.f32 %v2028, %v1636
        %2033 = vst [vmem:[%s524] sm:$0xff] %v2031
        %2034 = vst [vmem:[%s524 + $0x8] sm:$0xff] %v2032
        %s2035 = sand.u32 %s359, 1
        %s2036 = scalar_lea.sflag [#allocation4], %s2035
        %s2037 = sand.u32 %s359, 1
        %s2038 = smul.addr %s2037, 16
        %s2039 = scalar_lea.vmem [#allocation6], %s2038
        // Predicated region
        $region81: #{sparse_cross_encoder_block.1} parent=75 // pred_check
          %p2040 = pneg %p369
        $region82: #{sparse_cross_encoder_block.1} parent=75 // pred_check_branch
          %2042 = sbr.rel (%p2040) target = $region84
        $region83: #{sparse_cross_encoder_block.1} parent=75 // pred_region
          %s2043 = smul.u32 2, %s34
          %s2045 = ssub.s32 256, 256
          %2046 = vsyncadd %s2036, %s2045
          %s2047 = smul.addr %s33, 4
          %s2048 = sadd.s32 %s2043, %s2047
          %s2049 = smul.addr %s2048, 128
          %s2050 = scalar_lea.hbm %s14, %s2049
          %s2051 = sshll.u32 %s2039, 4
          %s2052 = int_to_ptr.vmem [resolvable:$true] %s2051
          %2057 = dma.vmem_to_hbm [thread:$0]  %s2052, 256, %s2050, %s2036, 128, 128, 8
        $region84: #{sparse_cross_encoder_block.1} parent=75 // pred_fallthru
          _
      $region76: #{sparse_cross_encoder_block.1} parent=5 // pred_fallthru
        _
      %p2058 = scmp.le.s32.totalorder 2, %s24
      // Predicated region
      $region85: #{sparse_cross_encoder_block.1} parent=5 // pred_check
        %p2059 = pneg %p2058
      $region86: #{sparse_cross_encoder_block.1} parent=5 // pred_check_branch
        %2061 = sbr.rel (%p2059) target = $region88
      $region87: #{sparse_cross_encoder_block.1} parent=5 // pred_region
        %s2062 = ssub.s32 %s24, 2
        // Predicated region
        $region89: #{sparse_cross_encoder_block.1} parent=87 // pred_check
          %p2063 = pneg %p375
        $region90: #{sparse_cross_encoder_block.1} parent=87 // pred_check_branch
          %2065 = sbr.rel (%p2063) target = $region92
        $region91: #{sparse_cross_encoder_block.1} parent=87 // pred_region
          %s2066 = sand.u32 %s360, 1
          %s2067 = scalar_lea.sflag [#allocation4], %s2066
          %s2068 = sand.u32 %s360, 1
          %s2069 = smul.addr %s2068, 16
          %s2070 = scalar_lea.vmem [#allocation6], %s2069
          %2071 = dma.done %s2067, 256
        $region92: #{sparse_cross_encoder_block.1} parent=87 // pred_fallthru
          _
      $region88: #{sparse_cross_encoder_block.1} parent=5 // pred_fallthru
        _
    $region6: #{sparse_cross_encoder_block.1} parent=1 // loop_footer
      %s28 = sadd.s32 1, %s24
    $region7: #{sparse_cross_encoder_block.1} parent=1 // loop_footer_branch
      %23 = sbr.rel target = $region3
    $region8: #{sparse_cross_encoder_block.1} parent=1 // loop_exit
      _
    %2072 = vsyncpa [#allocation4], 1
    %s2073 = scalar_lea.sflag [#allocation4], 1
    %2074 = vsyncpa %s2073, 1
    %2075 = vsyncpa [#allocation5], 1
    %s2076 = scalar_lea.sflag [#allocation5], 1
    %2077 = vsyncpa %s2076, 1

</llo_original>
